<compile_context>
chip_gen: v7x
topology: tpu7x:2x2x1
jax: 0.10.0
libtpu: 0.0.40
codegen_flags: <defaults>
</compile_context>

<pallas_src>
import functools
import math

import jax
import jax.numpy as jnp
from jax.experimental import pallas as pl
from jax.experimental.pallas import tpu as pltpu


def attention_kernel(x_ref, bias_ref, wqkv_ref, bqkv_ref, wout_ref, bout_ref,
                     o_ref, *, num_heads):
    # x_ref:    (bb, N, D)          bb batch elements for this grid step
    # bias_ref: (bb, 1, N)          additive key-padding bias (0 or -1e30)
    # wqkv_ref: (D, 3*D)            fused (pre-linear o in_proj) weights, columns
    #                               ordered [Q heads | K heads | V heads]; Q path
    #                               already scaled by 1/sqrt(dh)
    # bqkv_ref: (1, 3*D)            fused biases, same column order
    # wout_ref: (H, dh, Dp)         out_proj weight, split per head, zero-padded to Dp lanes
    # bout_ref: (1, Dp)             out_proj bias, zero-padded
    # o_ref:    (bb, N, Dp)         lane-dense output (wrapper slices back to D)
    bb, N, D = x_ref.shape
    H = num_heads
    dh = D // H
    Dp = o_ref.shape[-1]

    # Leading-dim merge is layout-free; the lane dim (D) is untouched.
    x2 = x_ref[...].reshape(bb * N, D)

    # One fused, lane-dense projection for Q, K, V of all heads.
    y = jnp.dot(x2, wqkv_ref[...], preferred_element_type=jnp.float32) + bqkv_ref[...]
    y = y.reshape(bb, N, 3 * D)                      # leading-dim split (free)

    # Hoist the (bb,1,N) -> (bb,N,N) mask broadcast out of the per-head loop.
    bias = jnp.broadcast_to(bias_ref[...], (bb, N, N))

    out = None
    # H is tiny and static (3); per-head views are static lane slices of y.
    for h in range(H):
        qh = y[:, :, h * dh:(h + 1) * dh]                    # (bb, N, dh)
        kh = y[:, :, D + h * dh: D + (h + 1) * dh]           # (bb, N, dh)
        vh = y[:, :, 2 * D + h * dh: 2 * D + (h + 1) * dh]   # (bb, N, dh)

        # Scores: contract the last dims directly (no explicit K^T relayout),
        # batched over the leading batch dim; Q already carries 1/sqrt(dh).
        s = jnp.einsum('bqe,bke->bqk', qh, kh,
                       preferred_element_type=jnp.float32) + bias   # (bb, N, N)

        # Numerically stable softmax; reciprocal goes to the EUP slot.
        m = jnp.max(s, axis=-1, keepdims=True)
        p = jnp.exp(s - m)
        l = jnp.sum(p, axis=-1, keepdims=True)
        p = p * pl.reciprocal(l, approx=True)

        oh = jnp.einsum('bqk,bke->bqe', p, vh,
                        preferred_element_type=jnp.float32)         # (bb, N, dh)

        # Fused head-sum + out_proj:  sum_h oh @ Wout_h  ==  concat_h(oh) @ Wout,
        # so no lane-dim concatenate and no broadcast of Wout is needed.
        contrib = jnp.dot(oh.reshape(bb * N, dh), wout_ref[h],
                          preferred_element_type=jnp.float32)       # (bb*N, Dp)
        out = contrib if out is None else out + contrib

    out = out + bout_ref[...]                       # (1, Dp) broadcasts over rows
    o_ref[...] = out.reshape(bb, N, Dp).astype(o_ref.dtype)


def pack_params(params, num_heads, *, lane_pad=128):
    """One-time wrapper-side precompute (plain JAX, outside pallas_call):
    fold pre-linear + in_proj + attention scale, fuse QKV into one (D, 3D) matrix,
    split out_proj per head and zero-pad its output width to a lane-dense multiple."""
    D = params["wout_t"].shape[0]
    H = num_heads
    dh = D // H
    scale = 1.0 / math.sqrt(dh)

    w_paths, b_paths = [], []
    for p in range(3):                                       # 0=q, 1=k, 2=v
        w_eff = params["wpre_t"][p] @ params["win_t"][p]                     # (D, D)
        b_eff = params["bpre"][p] @ params["win_t"][p] + params["bin"][p]    # (1, D)
        if p == 0:                                           # fold 1/sqrt(dh) into Q path
            w_eff = w_eff * scale
            b_eff = b_eff * scale
        w_paths.append(w_eff)
        b_paths.append(b_eff)

    wqkv = jnp.concatenate(w_paths, axis=1)                  # (D, 3D)
    bqkv = jnp.concatenate(b_paths, axis=1)                  # (1, 3D)

    # Zero-pad out_proj output width so kernel stores are unmasked full-lane vst.
    Dp = ((D + lane_pad - 1) // lane_pad) * lane_pad
    wout = params["wout_t"]                                  # (D, D)
    bout = params["bout"]                                    # (1, D)
    if Dp != D:
        wout = jnp.pad(wout, ((0, 0), (0, Dp - D)))
        bout = jnp.pad(bout, ((0, 0), (0, Dp - D)))
    wout_h = wout.reshape(H, dh, Dp)                         # (H, dh, Dp)

    return dict(wqkv=wqkv, bqkv=bqkv, wout_h=wout_h, bout=bout, Dp=Dp)


def attention_layer(x, mask_bool, packed, num_heads, *, batch_block=None):
    """x: (B, N, D) f32; mask_bool: (B, N) bool (True = padded key)."""
    B, N, D = x.shape
    H = num_heads
    dh = D // H
    Dp = packed["Dp"]
    bb = B if batch_block is None else batch_block
    assert B % bb == 0, "batch_block must divide the batch size"

    # Additive key-padding bias: 0 for valid keys, -1e30 for padded keys.
    bias = jnp.where(mask_bool, jnp.float32(-1e30), jnp.float32(0.0))[:, None, :]

    kernel = functools.partial(attention_kernel, num_heads=H)

    out_padded = pl.pallas_call(
        kernel,
        out_shape=jax.ShapeDtypeStruct((B, N, Dp), jnp.float32),
        grid=(B // bb,),
        in_specs=[
            pl.BlockSpec((bb, N, D), lambda i: (i, 0, 0)),      # x
            pl.BlockSpec((bb, 1, N), lambda i: (i, 0, 0)),      # additive mask bias
            pl.BlockSpec((D, 3 * D), lambda i: (0, 0)),         # fused QKV weight
            pl.BlockSpec((1, 3 * D), lambda i: (0, 0)),         # fused QKV bias
            pl.BlockSpec((H, dh, Dp), lambda i: (0, 0, 0)),     # out_proj weight (per head, padded)
            pl.BlockSpec((1, Dp), lambda i: (0, 0)),            # out_proj bias (padded)
        ],
        out_specs=pl.BlockSpec((bb, N, Dp), lambda i: (i, 0, 0)),
        compiler_params=pltpu.CompilerParams(
            dimension_semantics=("parallel",),
            vmem_limit_bytes=32 * 1024 * 1024,   # explicit; safely under v7x's 64 MiB
        ),
    )(x, bias, packed["wqkv"], packed["bqkv"], packed["wout_h"], packed["bout"])

    return out_padded[..., :D] if Dp != D else out_padded


def reference_attention(x, mask_bool, params, num_heads):
    """Pure-JAX mirror of the PyTorch module (unfused) for verification."""
    B, N, D = x.shape
    dh = D // num_heads
    scale = 1.0 / math.sqrt(dh)

    def one_batch(xb, mb):
        q1 = xb @ params["wpre_t"][0] + params["bpre"][0]
        k1 = xb @ params["wpre_t"][1] + params["bpre"][1]
        v1 = xb @ params["wpre_t"][2] + params["bpre"][2]
        Q = q1 @ params["win_t"][0] + params["bin"][0]
        K = k1 @ params["win_t"][1] + params["bin"][1]
        V = v1 @ params["win_t"][2] + params["bin"][2]
        outs = []
        for h in range(num_heads):
            Qh, Kh, Vh = (A[:, h * dh:(h + 1) * dh] for A in (Q, K, V))
            s = (Qh @ Kh.T) * scale
            s = jnp.where(mb[None, :], -jnp.inf, s)
            p = jax.nn.softmax(s, axis=-1)
            outs.append(p @ Vh)
        oc = jnp.concatenate(outs, axis=-1)
        return oc @ params["wout_t"] + params["bout"]

    return jax.vmap(one_batch)(x, mask_bool)


def init_params(key, D):
    """Deterministic init matching nn.Linear default ranges (U(-1/sqrt(D), 1/sqrt(D))).
    Weights stored already transposed for `x @ W^T` style application."""
    ks = jax.random.split(key, 8)
    bound = 1.0 / math.sqrt(D)
    u = lambda k, shape: jax.random.uniform(k, shape, jnp.float32, -bound, bound)
    wpre_t = u(ks[0], (3, D, D))    # self.query / self.key / self.value
    bpre = u(ks[1], (3, 1, D))
    win_t = u(ks[2], (3, D, D))     # MHA in_proj (q, k, v)
    bin_ = u(ks[3], (3, 1, D))
    wout_t = u(ks[4], (D, D))       # MHA out_proj
    bout = u(ks[5], (1, D))
    return dict(wpre_t=wpre_t, bpre=bpre, win_t=win_t, bin=bin_,
                wout_t=wout_t, bout=bout)


if __name__ == "__main__":
    B, N, D, H = 2, 8, 48, 3

    key = jax.random.PRNGKey(0)
    kx, kp = jax.random.split(key)
    x = jax.random.normal(kx, (B, N, D), jnp.float32)

    # key_padding_mask: True = padded. Pad the last few atoms per batch element.
    lengths = jnp.array([6, 5], dtype=jnp.int32)
    mask = jnp.arange(N)[None, :] >= lengths[:, None]          # (B, N) bool

    params = init_params(kp, D)
    packed = pack_params(params, H)                            # one-time fold/pack
    ref = reference_attention(x, mask, params, H)

    # Tolerance covers the approximate EUP reciprocal and the (exact, but
    # differently-rounded) folded-weight matmuls.
    TOL = 2e-3

    # v5e/v6e-friendly configuration: whole batch folded into a single grid step
    # (removes per-step pipeline overhead, which dominates at these shapes).
    out = jax.block_until_ready(attention_layer(x, mask, packed, H, batch_block=B))
    assert out.shape == (B, N, D)
    assert jnp.allclose(out, ref, atol=TOL, rtol=TOL), "mismatch vs reference (bb=B)"

    # v7x-friendly configuration: grid=(2,) "parallel" so both TensorCores get work.
    out_p = jax.block_until_ready(attention_layer(x, mask, packed, H, batch_block=1))
    assert jnp.allclose(out_p, ref, atol=TOL, rtol=TOL), "mismatch vs reference (bb=1)"

    print("KERNEL_OK")
</pallas_src>

<mosaic_0001>
module attributes {stable_mosaic.version = 11 : i64} {
  func.func @attention_kernel(%arg0: i32, %arg1: memref<2x8x48xf32, #tpu.memory_space<vmem>>, %arg2: memref<2x1x8xf32, #tpu.memory_space<vmem>>, %arg3: memref<48x144xf32, #tpu.memory_space<vmem>>, %arg4: memref<1x144xf32, #tpu.memory_space<vmem>>, %arg5: memref<3x16x128xf32, #tpu.memory_space<vmem>>, %arg6: memref<1x128xf32, #tpu.memory_space<vmem>>, %arg7: memref<2x8x128xf32, #tpu.memory_space<vmem>>) attributes {dimension_semantics = [#tpu.dimension_semantics<parallel>], iteration_bounds = array<i64: 1>, scalar_prefetch = 0 : i64, scratch_operands = 0 : i64, tpu.core_type = #tpu.core_type<tc>, window_params = [{transform_indices = @transform_0, window_bounds = array<i64: 2, 8, 48>}, {transform_indices = @transform_1, window_bounds = array<i64: 2, 1, 8>}, {pipeline_mode = #tpu.pipeline_mode<synchronous>, transform_indices = @transform_2, window_bounds = array<i64: 48, 144>}, {pipeline_mode = #tpu.pipeline_mode<synchronous>, transform_indices = @transform_3, window_bounds = array<i64: 1, 144>}, {pipeline_mode = #tpu.pipeline_mode<synchronous>, transform_indices = @transform_4, window_bounds = array<i64: 3, 16, 128>}, {pipeline_mode = #tpu.pipeline_mode<synchronous>, transform_indices = @transform_5, window_bounds = array<i64: 1, 128>}, {transform_indices = @transform_6, window_bounds = array<i64: 2, 8, 128>}]} {
    %c0 = arith.constant 0 : index
    %c0_0 = arith.constant 0 : index
    %c0_1 = arith.constant 0 : index
    %0 = vector.load %arg1[%c0, %c0_0, %c0_1] : memref<2x8x48xf32, #tpu.memory_space<vmem>>, vector<2x8x48xf32>
    %1 = vector.shape_cast %0 : vector<2x8x48xf32> to vector<16x48xf32>
    %c0_2 = arith.constant 0 : index
    %c0_3 = arith.constant 0 : index
    %2 = vector.load %arg3[%c0_2, %c0_3] : memref<48x144xf32, #tpu.memory_space<vmem>>, vector<48x144xf32>
    %cst = arith.constant dense<0.000000e+00> : vector<16x144xf32>
    %3 = tpu.matmul %1, %2, %cst {dimension_numbers = #tpu.dot_dimension_numbers<[1], [0], [0], [1], [0, 0, 1, 1], [], []>} : vector<16x48xf32>, vector<48x144xf32>, vector<16x144xf32> -> vector<16x144xf32>
    %c0_4 = arith.constant 0 : index
    %c0_5 = arith.constant 0 : index
    %4 = vector.load %arg4[%c0_4, %c0_5] : memref<1x144xf32, #tpu.memory_space<vmem>>, vector<1x144xf32>
    %5 = vector.broadcast %4 : vector<1x144xf32> to vector<16x144xf32>
    %6 = arith.addf %3, %5 : vector<16x144xf32>
    %7 = vector.shape_cast %6 : vector<16x144xf32> to vector<2x8x144xf32>
    %c0_6 = arith.constant 0 : index
    %c0_7 = arith.constant 0 : index
    %c0_8 = arith.constant 0 : index
    %8 = vector.load %arg2[%c0_6, %c0_7, %c0_8] : memref<2x1x8xf32, #tpu.memory_space<vmem>>, vector<2x1x8xf32>
    %9 = vector.shape_cast %8 : vector<2x1x8xf32> to vector<2x1x8xf32>
    %10 = vector.broadcast %9 : vector<2x1x8xf32> to vector<2x8x8xf32>
    %11 = vector.extract_strided_slice %7 {offsets = [0, 0, 0], sizes = [2, 8, 16], strides = [1, 1, 1]} : vector<2x8x144xf32> to vector<2x8x16xf32>
    %12 = vector.extract_strided_slice %7 {offsets = [0, 0, 48], sizes = [2, 8, 16], strides = [1, 1, 1]} : vector<2x8x144xf32> to vector<2x8x16xf32>
    %13 = vector.extract_strided_slice %7 {offsets = [0, 0, 96], sizes = [2, 8, 16], strides = [1, 1, 1]} : vector<2x8x144xf32> to vector<2x8x16xf32>
    "tpu.trace_start"() <{level = 10 : i32, message = "bqe,bke->bqk"}> : () -> ()
    %cst_9 = arith.constant dense<0.000000e+00> : vector<2x8x8xf32>
    %14 = tpu.matmul %11, %12, %cst_9 {dimension_numbers = #tpu.dot_dimension_numbers<[2], [2], [1], [1], [0, 0, 0, 1, 1, 1], [0], [0]>} : vector<2x8x16xf32>, vector<2x8x16xf32>, vector<2x8x8xf32> -> vector<2x8x8xf32>
    "tpu.trace_stop"() : () -> ()
    %15 = arith.addf %14, %10 : vector<2x8x8xf32>
    %cst_10 = arith.constant dense<0xFF800000> : vector<2x8xf32>
    %16 = vector.multi_reduction <maximumf>, %15, %cst_10 [2] : vector<2x8x8xf32> to vector<2x8xf32>
    %17 = vector.shape_cast %16 : vector<2x8xf32> to vector<2x8x1xf32>
    %18 = vector.broadcast %17 : vector<2x8x1xf32> to vector<2x8x8xf32>
    %19 = arith.subf %15, %18 : vector<2x8x8xf32>
    %20 = math.exp %19 : vector<2x8x8xf32>
    %cst_11 = arith.constant dense<0.000000e+00> : vector<2x8xf32>
    %21 = vector.multi_reduction <add>, %20, %cst_11 [2] : vector<2x8x8xf32> to vector<2x8xf32>
    %22 = vector.shape_cast %21 : vector<2x8xf32> to vector<2x8x1xf32>
    %23 = tpu.reciprocal %22 {approx = true} : vector<2x8x1xf32> -> vector<2x8x1xf32>
    %24 = vector.broadcast %23 : vector<2x8x1xf32> to vector<2x8x8xf32>
    %25 = arith.mulf %20, %24 : vector<2x8x8xf32>
    "tpu.trace_start"() <{level = 10 : i32, message = "bqk,bke->bqe"}> : () -> ()
    %cst_12 = arith.constant dense<0.000000e+00> : vector<2x8x16xf32>
    %26 = tpu.matmul %25, %13, %cst_12 {dimension_numbers = #tpu.dot_dimension_numbers<[2], [1], [1], [2], [0, 0, 0, 1, 1, 2], [0], [0]>} : vector<2x8x8xf32>, vector<2x8x16xf32>, vector<2x8x16xf32> -> vector<2x8x16xf32>
    "tpu.trace_stop"() : () -> ()
    %27 = vector.shape_cast %26 : vector<2x8x16xf32> to vector<16x16xf32>
    %c0_13 = arith.constant 0 : index
    %c0_14 = arith.constant 0 : index
    %c0_15 = arith.constant 0 : index
    %28 = vector.load %arg5[%c0_13, %c0_14, %c0_15] : memref<3x16x128xf32, #tpu.memory_space<vmem>>, vector<1x16x128xf32>
    %29 = vector.shape_cast %28 : vector<1x16x128xf32> to vector<16x128xf32>
    %cst_16 = arith.constant dense<0.000000e+00> : vector<16x128xf32>
    %30 = tpu.matmul %27, %29, %cst_16 {dimension_numbers = #tpu.dot_dimension_numbers<[1], [0], [0], [1], [0, 0, 1, 1], [], []>} : vector<16x16xf32>, vector<16x128xf32>, vector<16x128xf32> -> vector<16x128xf32>
    %31 = vector.extract_strided_slice %7 {offsets = [0, 0, 16], sizes = [2, 8, 16], strides = [1, 1, 1]} : vector<2x8x144xf32> to vector<2x8x16xf32>
    %32 = vector.extract_strided_slice %7 {offsets = [0, 0, 64], sizes = [2, 8, 16], strides = [1, 1, 1]} : vector<2x8x144xf32> to vector<2x8x16xf32>
    %33 = vector.extract_strided_slice %7 {offsets = [0, 0, 112], sizes = [2, 8, 16], strides = [1, 1, 1]} : vector<2x8x144xf32> to vector<2x8x16xf32>
    "tpu.trace_start"() <{level = 10 : i32, message = "bqe,bke->bqk"}> : () -> ()
    %cst_17 = arith.constant dense<0.000000e+00> : vector<2x8x8xf32>
    %34 = tpu.matmul %31, %32, %cst_17 {dimension_numbers = #tpu.dot_dimension_numbers<[2], [2], [1], [1], [0, 0, 0, 1, 1, 1], [0], [0]>} : vector<2x8x16xf32>, vector<2x8x16xf32>, vector<2x8x8xf32> -> vector<2x8x8xf32>
    "tpu.trace_stop"() : () -> ()
    %35 = arith.addf %34, %10 : vector<2x8x8xf32>
    %cst_18 = arith.constant dense<0xFF800000> : vector<2x8xf32>
    %36 = vector.multi_reduction <maximumf>, %35, %cst_18 [2] : vector<2x8x8xf32> to vector<2x8xf32>
    %37 = vector.shape_cast %36 : vector<2x8xf32> to vector<2x8x1xf32>
    %38 = vector.broadcast %37 : vector<2x8x1xf32> to vector<2x8x8xf32>
    %39 = arith.subf %35, %38 : vector<2x8x8xf32>
    %40 = math.exp %39 : vector<2x8x8xf32>
    %cst_19 = arith.constant dense<0.000000e+00> : vector<2x8xf32>
    %41 = vector.multi_reduction <add>, %40, %cst_19 [2] : vector<2x8x8xf32> to vector<2x8xf32>
    %42 = vector.shape_cast %41 : vector<2x8xf32> to vector<2x8x1xf32>
    %43 = tpu.reciprocal %42 {approx = true} : vector<2x8x1xf32> -> vector<2x8x1xf32>
    %44 = vector.broadcast %43 : vector<2x8x1xf32> to vector<2x8x8xf32>
    %45 = arith.mulf %40, %44 : vector<2x8x8xf32>
    "tpu.trace_start"() <{level = 10 : i32, message = "bqk,bke->bqe"}> : () -> ()
    %cst_20 = arith.constant dense<0.000000e+00> : vector<2x8x16xf32>
    %46 = tpu.matmul %45, %33, %cst_20 {dimension_numbers = #tpu.dot_dimension_numbers<[2], [1], [1], [2], [0, 0, 0, 1, 1, 2], [0], [0]>} : vector<2x8x8xf32>, vector<2x8x16xf32>, vector<2x8x16xf32> -> vector<2x8x16xf32>
    "tpu.trace_stop"() : () -> ()
    %47 = vector.shape_cast %46 : vector<2x8x16xf32> to vector<16x16xf32>
    %c1 = arith.constant 1 : index
    %c0_21 = arith.constant 0 : index
    %c0_22 = arith.constant 0 : index
    %48 = vector.load %arg5[%c1, %c0_21, %c0_22] : memref<3x16x128xf32, #tpu.memory_space<vmem>>, vector<1x16x128xf32>
    %49 = vector.shape_cast %48 : vector<1x16x128xf32> to vector<16x128xf32>
    %cst_23 = arith.constant dense<0.000000e+00> : vector<16x128xf32>
    %50 = tpu.matmul %47, %49, %cst_23 {dimension_numbers = #tpu.dot_dimension_numbers<[1], [0], [0], [1], [0, 0, 1, 1], [], []>} : vector<16x16xf32>, vector<16x128xf32>, vector<16x128xf32> -> vector<16x128xf32>
    %51 = arith.addf %30, %50 : vector<16x128xf32>
    %52 = vector.extract_strided_slice %7 {offsets = [0, 0, 32], sizes = [2, 8, 16], strides = [1, 1, 1]} : vector<2x8x144xf32> to vector<2x8x16xf32>
    %53 = vector.extract_strided_slice %7 {offsets = [0, 0, 80], sizes = [2, 8, 16], strides = [1, 1, 1]} : vector<2x8x144xf32> to vector<2x8x16xf32>
    %54 = vector.extract_strided_slice %7 {offsets = [0, 0, 128], sizes = [2, 8, 16], strides = [1, 1, 1]} : vector<2x8x144xf32> to vector<2x8x16xf32>
    "tpu.trace_start"() <{level = 10 : i32, message = "bqe,bke->bqk"}> : () -> ()
    %cst_24 = arith.constant dense<0.000000e+00> : vector<2x8x8xf32>
    %55 = tpu.matmul %52, %53, %cst_24 {dimension_numbers = #tpu.dot_dimension_numbers<[2], [2], [1], [1], [0, 0, 0, 1, 1, 1], [0], [0]>} : vector<2x8x16xf32>, vector<2x8x16xf32>, vector<2x8x8xf32> -> vector<2x8x8xf32>
    "tpu.trace_stop"() : () -> ()
    %56 = arith.addf %55, %10 : vector<2x8x8xf32>
    %cst_25 = arith.constant dense<0xFF800000> : vector<2x8xf32>
    %57 = vector.multi_reduction <maximumf>, %56, %cst_25 [2] : vector<2x8x8xf32> to vector<2x8xf32>
    %58 = vector.shape_cast %57 : vector<2x8xf32> to vector<2x8x1xf32>
    %59 = vector.broadcast %58 : vector<2x8x1xf32> to vector<2x8x8xf32>
    %60 = arith.subf %56, %59 : vector<2x8x8xf32>
    %61 = math.exp %60 : vector<2x8x8xf32>
    %cst_26 = arith.constant dense<0.000000e+00> : vector<2x8xf32>
    %62 = vector.multi_reduction <add>, %61, %cst_26 [2] : vector<2x8x8xf32> to vector<2x8xf32>
    %63 = vector.shape_cast %62 : vector<2x8xf32> to vector<2x8x1xf32>
    %64 = tpu.reciprocal %63 {approx = true} : vector<2x8x1xf32> -> vector<2x8x1xf32>
    %65 = vector.broadcast %64 : vector<2x8x1xf32> to vector<2x8x8xf32>
    %66 = arith.mulf %61, %65 : vector<2x8x8xf32>
    "tpu.trace_start"() <{level = 10 : i32, message = "bqk,bke->bqe"}> : () -> ()
    %cst_27 = arith.constant dense<0.000000e+00> : vector<2x8x16xf32>
    %67 = tpu.matmul %66, %54, %cst_27 {dimension_numbers = #tpu.dot_dimension_numbers<[2], [1], [1], [2], [0, 0, 0, 1, 1, 2], [0], [0]>} : vector<2x8x8xf32>, vector<2x8x16xf32>, vector<2x8x16xf32> -> vector<2x8x16xf32>
    "tpu.trace_stop"() : () -> ()
    %68 = vector.shape_cast %67 : vector<2x8x16xf32> to vector<16x16xf32>
    %c2 = arith.constant 2 : index
    %c0_28 = arith.constant 0 : index
    %c0_29 = arith.constant 0 : index
    %69 = vector.load %arg5[%c2, %c0_28, %c0_29] : memref<3x16x128xf32, #tpu.memory_space<vmem>>, vector<1x16x128xf32>
    %70 = vector.shape_cast %69 : vector<1x16x128xf32> to vector<16x128xf32>
    %cst_30 = arith.constant dense<0.000000e+00> : vector<16x128xf32>
    %71 = tpu.matmul %68, %70, %cst_30 {dimension_numbers = #tpu.dot_dimension_numbers<[1], [0], [0], [1], [0, 0, 1, 1], [], []>} : vector<16x16xf32>, vector<16x128xf32>, vector<16x128xf32> -> vector<16x128xf32>
    %72 = arith.addf %51, %71 : vector<16x128xf32>
    %c0_31 = arith.constant 0 : index
    %c0_32 = arith.constant 0 : index
    %73 = vector.load %arg6[%c0_31, %c0_32] : memref<1x128xf32, #tpu.memory_space<vmem>>, vector<1x128xf32>
    %74 = vector.broadcast %73 : vector<1x128xf32> to vector<16x128xf32>
    %75 = arith.addf %72, %74 : vector<16x128xf32>
    %76 = vector.shape_cast %75 : vector<16x128xf32> to vector<2x8x128xf32>
    %c0_33 = arith.constant 0 : index
    %c0_34 = arith.constant 0 : index
    %c0_35 = arith.constant 0 : index
    %77 = vector.load %arg7[%c0_33, %c0_34, %c0_35] : memref<2x8x128xf32, #tpu.memory_space<vmem>>, vector<2x8x128xf32>
    tpu.vector_store %arg7[%c0_33, %c0_34, %c0_35], %76 {strides = array<i32>} : memref<2x8x128xf32, #tpu.memory_space<vmem>>, vector<2x8x128xf32>,
    return
  }
  func.func @transform_0(%arg0: i32) -> (i32, i32, i32) {
    %c0_i32 = arith.constant 0 : i32
    %c0_i32_0 = arith.constant 0 : i32
    %c0_i32_1 = arith.constant 0 : i32
    return %arg0, %c0_i32, %c0_i32_0 : i32, i32, i32
  }
  func.func @transform_1(%arg0: i32) -> (i32, i32, i32) {
    %c0_i32 = arith.constant 0 : i32
    %c0_i32_0 = arith.constant 0 : i32
    %c0_i32_1 = arith.constant 0 : i32
    return %arg0, %c0_i32, %c0_i32_0 : i32, i32, i32
  }
  func.func @transform_2(%arg0: i32) -> (i32, i32) {
    %c0_i32 = arith.constant 0 : i32
    %c0_i32_0 = arith.constant 0 : i32
    %c0_i32_1 = arith.constant 0 : i32
    return %c0_i32, %c0_i32_0 : i32, i32
  }
  func.func @transform_3(%arg0: i32) -> (i32, i32) {
    %c0_i32 = arith.constant 0 : i32
    %c0_i32_0 = arith.constant 0 : i32
    %c0_i32_1 = arith.constant 0 : i32
    return %c0_i32, %c0_i32_0 : i32, i32
  }
  func.func @transform_4(%arg0: i32) -> (i32, i32, i32) {
    %c0_i32 = arith.constant 0 : i32
    %c0_i32_0 = arith.constant 0 : i32
    %c0_i32_1 = arith.constant 0 : i32
    %c0_i32_2 = arith.constant 0 : i32
    return %c0_i32, %c0_i32_0, %c0_i32_1 : i32, i32, i32
  }
  func.func @transform_5(%arg0: i32) -> (i32, i32) {
    %c0_i32 = arith.constant 0 : i32
    %c0_i32_0 = arith.constant 0 : i32
    %c0_i32_1 = arith.constant 0 : i32
    return %c0_i32, %c0_i32_0 : i32, i32
  }
  func.func @transform_6(%arg0: i32) -> (i32, i32, i32) {
    %c0_i32 = arith.constant 0 : i32
    %c0_i32_0 = arith.constant 0 : i32
    %c0_i32_1 = arith.constant 0 : i32
    return %arg0, %c0_i32, %c0_i32_0 : i32, i32, i32
  }
}

</mosaic_0001>

<llo_original>
// kernel: tpu_custom_call.1
$region0: #{tpu_custom_call.1}
  #allocation0 [shape = 'u32[]', space=smem, size = 0x4, offset = 0x4, fixed_abs, tag = 'smem constant byte address 0x4 - core index']
  #allocation1 [shape = 'u32[144,128]{1,0:T(1,128)}', space=vmem, size = 0x12000, scoped, tag = 'internal scratch']
  %s0 = inlined_call_operand.hbm [shape: f32[2,8,48], index: 0, kind: input, shape index: {}]
  %s1 = inlined_call_operand.vmem [shape: f32[2,1,8], index: 1, kind: input, shape index: {}]
  %s2 = inlined_call_operand.hbm [shape: f32[48,144], index: 2, kind: input, shape index: {}]
  %s3 = inlined_call_operand.vmem [shape: f32[1,144], index: 3, kind: input, shape index: {}]
  %s4 = inlined_call_operand.hbm [shape: f32[3,16,128], index: 4, kind: input, shape index: {}]
  %s5 = inlined_call_operand.vmem [shape: f32[1,128], index: 5, kind: input, shape index: {}]
  %s6 = inlined_call_operand.hbm [shape: f32[2,8,128], index: 6, kind: output, shape index: {}]
  %s7 = sld [smem:[#allocation0]]
  $region46: #{tpu_custom_call.1} parent=0
    _
  %s9 = ssub.s32 1, %s7
  %s10 = scalar_select 0, %s9, %s7
  $region1: #{tpu_custom_call.1} parent=0
    #allocation2 [shape = 'u8[8192]{0}', space=vmem, size = 0x2000, scoped, tag = 'input window, operand 0, single buffered']
    #allocation3 [shape = 's32[1]{0}', space=sflag, size = 0x4, scoped, tag = 'scoped memory for tpu_custom_call.1']
    #allocation4 [shape = 's32[1]{0}', space=sflag, size = 0x4, scoped, tag = 'scoped memory for tpu_custom_call.1']
    #allocation5 [shape = 'u8[49152]{0}', space=vmem, size = 0xc000, scoped, tag = 'input window, operand 2, single buffered']
    #allocation6 [shape = 's32[1]{0}', space=sflag, size = 0x4, scoped, tag = 'scoped memory for tpu_custom_call.1']
    #allocation7 [shape = 'u8[24576]{0}', space=vmem, size = 0x6000, scoped, tag = 'input window, operand 4, single buffered']
    #allocation8 [shape = 'u8[8192]{0}', space=vmem, size = 0x2000, scoped, tag = 'output window, operand 0, single buffered']
    %11 = vsyncpa [#allocation3], 0
    %12 = vsyncpa [#allocation6], 0
    %13 = vsyncpa [#allocation4], 0
    // Predicated region
    $region2: #{tpu_custom_call.1} parent=1 // pred_check
      _
    $region3: #{tpu_custom_call.1} parent=1 // pred_check_branch
      %15 = sbr.rel (0) target = $region5
    $region4: #{tpu_custom_call.1} parent=1 // pred_region
      %s17 = ssub.s32 256, 256
      %18 = vsyncadd [#allocation3], %s17
      %s19 = sshll.u32 [#allocation2], 4
      %s20 = int_to_ptr.vmem [resolvable:$true] %s19
      %25 = dma.hbm_to_vmem [thread:$0]  %s0, 256, %s20, [#allocation3], 128, 128, 8
    $region5: #{tpu_custom_call.1} parent=1 // pred_fallthru
      _
    // Predicated region
    $region6: #{tpu_custom_call.1} parent=1 // pred_check
      _
    $region7: #{tpu_custom_call.1} parent=1 // pred_check_branch
      %27 = sbr.rel (0) target = $region9
    $region8: #{tpu_custom_call.1} parent=1 // pred_region
      _
    $region9: #{tpu_custom_call.1} parent=1 // pred_fallthru
      _
    // Predicated region
    $region10: #{tpu_custom_call.1} parent=1 // pred_check
      _
    $region11: #{tpu_custom_call.1} parent=1 // pred_check_branch
      %29 = sbr.rel (0) target = $region13
    $region12: #{tpu_custom_call.1} parent=1 // pred_region
      %s31 = ssub.s32 1536, 1536
      %32 = vsyncadd [#allocation6], %s31
      %s33 = sshll.u32 [#allocation5], 4
      %s34 = int_to_ptr.vmem [resolvable:$true] %s33
      %39 = dma.hbm_to_vmem [thread:$0]  %s2, 1536, %s34, [#allocation6], 256, 256, 16
    $region13: #{tpu_custom_call.1} parent=1 // pred_fallthru
      _
    // Predicated region
    $region14: #{tpu_custom_call.1} parent=1 // pred_check
      _
    $region15: #{tpu_custom_call.1} parent=1 // pred_check_branch
      %41 = sbr.rel (0) target = $region17
    $region16: #{tpu_custom_call.1} parent=1 // pred_region
      _
    $region17: #{tpu_custom_call.1} parent=1 // pred_fallthru
      _
    // Predicated region
    $region18: #{tpu_custom_call.1} parent=1 // pred_check
      _
    $region19: #{tpu_custom_call.1} parent=1 // pred_check_branch
      %43 = sbr.rel (0) target = $region21
    $region20: #{tpu_custom_call.1} parent=1 // pred_region
      %s45 = ssub.s32 768, 768
      %46 = vsyncadd [#allocation6], %s45
      %s47 = sshll.u32 [#allocation7], 4
      %s48 = int_to_ptr.vmem [resolvable:$true] %s47
      %53 = dma.hbm_to_vmem [thread:$0]  %s4, 768, %s48, [#allocation6], 128, 128, 8
    $region21: #{tpu_custom_call.1} parent=1 // pred_fallthru
      _
    // Predicated region
    $region22: #{tpu_custom_call.1} parent=1 // pred_check
      _
    $region23: #{tpu_custom_call.1} parent=1 // pred_check_branch
      %55 = sbr.rel (0) target = $region25
    $region24: #{tpu_custom_call.1} parent=1 // pred_region
      _
    $region25: #{tpu_custom_call.1} parent=1 // pred_fallthru
      _
    // Predicated region
    $region26: #{tpu_custom_call.1} parent=1 // pred_check
      _
    $region27: #{tpu_custom_call.1} parent=1 // pred_check_branch
      %57 = sbr.rel (0) target = $region29
    $region28: #{tpu_custom_call.1} parent=1 // pred_region
      %58 = dma.done [#allocation3], 256
    $region29: #{tpu_custom_call.1} parent=1 // pred_fallthru
      _
    // Predicated region
    $region30: #{tpu_custom_call.1} parent=1 // pred_check
      _
    $region31: #{tpu_custom_call.1} parent=1 // pred_check_branch
      %60 = sbr.rel (0) target = $region33
    $region32: #{tpu_custom_call.1} parent=1 // pred_region
      %61 = dma.done [#allocation6], 1536
    $region33: #{tpu_custom_call.1} parent=1 // pred_fallthru
      _
    // Predicated region
    $region34: #{tpu_custom_call.1} parent=1 // pred_check
      _
    $region35: #{tpu_custom_call.1} parent=1 // pred_check_branch
      %63 = sbr.rel (0) target = $region37
    $region36: #{tpu_custom_call.1} parent=1 // pred_region
      %64 = dma.done [#allocation6], 768
    $region37: #{tpu_custom_call.1} parent=1 // pred_fallthru
      _
    %v65 = vld [vmem:[#allocation2] sm:$0xff]
    %v66 = vld [vmem:[#allocation2 + $0x8] sm:$0xff]
    %v67 = vld [vmem:[#allocation5] sm:$0xff]
    %v68 = vld [vmem:[#allocation5 + $0x8] sm:$0xff]
    %v69 = vld [vmem:[#allocation5 + $0x10] sm:$0xff]
    %v70 = vld [vmem:[#allocation5 + $0x18] sm:$0xff]
    %v71 = vld [vmem:[#allocation5 + $0x20] sm:$0xff]
    %v72 = vld [vmem:[#allocation5 + $0x28] sm:$0xff]
    %v73 = vld [vmem:[#allocation5 + $0x30] sm:$0xff]
    %v74 = vld [vmem:[#allocation5 + $0x38] sm:$0xff]
    %v75 = vld [vmem:[#allocation5 + $0x40] sm:$0xff]
    %v76 = vld [vmem:[#allocation5 + $0x48] sm:$0xff]
    %v77 = vld [vmem:[#allocation5 + $0x50] sm:$0xff]
    %v78 = vld [vmem:[#allocation5 + $0x58] sm:$0xff]
    %v79 = vld [vmem:[%s3] sm:$0x3]
    %v81 = vlaneseq
    %v82 = vshrl.u32 %v81, 7
    %v83 = vsub.s32 0, %v82
    %v84 = vrot.slane %v79, %v83
    %v85 = vlaneseq
    %v86 = vshrl.u32 %v85, 7
    %v87 = vsub.s32 1, %v86
    %v88 = vrot.slane %v79, %v87
    %vm91 = vcmask 392192
    %v93 = vsel %vm91, %v65, 0
    %v96 = vsel %vm91, %v66, 0
    %98 = vmatprep.subr.mxu0 %v68
    %99 = vmatpush1.msra.mxu0 %v67
    %100 = vmatprep.subr.mxu0 %v70
    %101 = vmatpush1.msra.mxu0 %v69
    %102 = vmatprep.subr.mxu0 %v72
    %103 = vmatpush1.msra.mxu0 %v71
    %104 = vmatprep.subr.mxu0 %v74
    %105 = vmatpush1.msra.mxu0 %v73
    %106 = vmatprep.subr.mxu0 %v76
    %107 = vmatpush1.msra.mxu0 %v75
    %108 = vmatprep.subr.mxu0 %v78
    %109 = vmatpush1.msra.mxu0 %v77
    %110 = vmatprep.subr.mxu0 0.0
    %111 = vmatpush1.msra.mxu0 0.0
    %112 = vmatprep.subr.mxu0 0.0
    %113 = vmatpush1.msra.mxu0 0.0
    %114 = vmatprep.subr.mxu0 0.0
    %115 = vmatpush1.msra.mxu0 0.0
    %116 = vmatprep.subr.mxu0 0.0
    %117 = vmatpush1.msra.mxu0 0.0
    %118 = vmatprep.subr.mxu0 0.0
    %119 = vmatpush1.msra.mxu0 0.0
    %120 = vmatprep.subr.mxu0 0.0
    %121 = vmatpush1.msra.mxu0 0.0
    %122 = vmatprep.subr.mxu0 0.0
    %123 = vmatpush1.msra.mxu0 0.0
    %124 = vmatprep.subr.mxu0 0.0
    %125 = vmatpush1.msra.mxu0 0.0
    %126 = vmatprep.subr.mxu0 0.0
    %127 = vmatpush1.msra.mxu0 0.0
    %128 = vmatprep.subr.mxu0 0.0
    %129 = vmatpush1.msra.mxu0 0.0
    %130 = vmatprep.subr.mxu0 0.0
    %131 = vmatpush1.msra.mxu0 0.0
    %132 = vmatprep.subr.mxu0 0.0
    %133 = vmatpush1.msra.mxu0 0.0
    %134 = vmatprep.subr.mxu0 0.0
    %135 = vmatpush1.msra.mxu0 0.0
    %136 = vmatprep.subr.mxu0 0.0
    %137 = vmatpush1.msra.mxu0 0.0
    %138 = vmatprep.subr.mxu0 0.0
    %139 = vmatpush1.msra.mxu0 0.0
    %140 = vmatprep.subr.mxu0 0.0
    %141 = vmatpush1.msra.mxu0 0.0
    %142 = vmatprep.subr.mxu0 0.0
    %143 = vmatpush1.msra.mxu0 0.0
    %144 = vmatprep.subr.mxu0 0.0
    %145 = vmatpush1.msra.mxu0 0.0
    %146 = vmatprep.subr.mxu0 0.0
    %147 = vmatpush1.msra.mxu0 0.0
    %148 = vmatprep.subr.mxu0 0.0
    %149 = vmatpush1.msra.mxu0 0.0
    %150 = vmatprep.subr.mxu0 0.0
    %151 = vmatpush1.msra.mxu0 0.0
    %152 = vmatprep.subr.mxu0 0.0
    %153 = vmatpush1.msra.mxu0 0.0
    %154 = vmatprep.subr.mxu0 0.0
    %155 = vmatpush1.msra.mxu0 0.0
    %156 = vmatprep.subr.mxu0 0.0
    %157 = vmatpush1.msra.mxu0 0.0
    %158 = vmatprep.subr.mxu0 0.0
    %159 = vmatpush1.msra.mxu0 0.0
    %160 = vmatprep.subr.mxu0 0.0
    %161 = vmatpush1.msra.mxu0 0.0
    %162 = vmatprep.mubr.f32.mxu0 0.0
    %163 = vmatmul.mubr.f32.gmra.mrb[0].mxu0 %v93
    %v164 = vpop.f32.mrb[0].mxu0
    %v165 = vadd.f32 %v84, %v164
    %v166 = vpop.f32.mrb[0].mxu0
    %v167 = vadd.f32 %v88, %v166
    %168 = vmatprep.mubr.f32.mxu0 0.0
    %169 = vmatmul.mubr.f32.gmra.mrb[0].mxu0 %v96
    %v170 = vpop.f32.mrb[0].mxu0
    %v171 = vadd.f32 %v84, %v170
    %v172 = vpop.f32.mrb[0].mxu0
    %v173 = vadd.f32 %v88, %v172
    %174 = vdwg.mxu0
    %v175 = vld [vmem:[%s1] sm:$0x1]
    %v176 = vld [vmem:[%s1 + $0x1] sm:$0x1]
    %v179 = vlaneseq
    %v180 = vshrl.u32 %v179, 7
    %v181 = vsub.s32 0, %v180
    %v182 = vrot.slane %v175, %v181
    %v183 = vlaneseq
    %v184 = vshrl.u32 %v183, 7
    %v185 = vsub.s32 0, %v184
    %v186 = vrot.slane %v176, %v185
    %190 = vrot.lane.b32.xlu0 %v165, 80
    %v191 = vpop.permute.xlu0 %190
    %vm192 = vcmask 130048
    %v193 = vsel %vm192, %v165, 0
    %v195 = vsel %vm192, %v191, 0
    %197 = vmatprep.subr.mxu0 0.0
    %198 = vmatpush1.xpose.msra.mxu0 %v195
    %199 = vmatprep.subr.mxu0 0.0
    %200 = vmatpush1.xpose.msra.mxu0 0.0
    %201 = vmatprep.subr.mxu0 0.0
    %202 = vmatpush1.xpose.msra.mxu0 0.0
    %203 = vmatprep.subr.mxu0 0.0
    %204 = vmatpush1.xpose.msra.mxu0 0.0
    %205 = vmatprep.subr.mxu0 0.0
    %206 = vmatpush1.xpose.msra.mxu0 0.0
    %207 = vmatprep.subr.mxu0 0.0
    %208 = vmatpush1.xpose.msra.mxu0 0.0
    %209 = vmatprep.subr.mxu0 0.0
    %210 = vmatpush1.xpose.msra.mxu0 0.0
    %211 = vmatprep.subr.mxu0 0.0
    %212 = vmatpush1.xpose.msra.mxu0 0.0
    %213 = vmatprep.subr.mxu0 0.0
    %214 = vmatpush1.xpose.msra.mxu0 0.0
    %215 = vmatprep.subr.mxu0 0.0
    %216 = vmatpush1.xpose.msra.mxu0 0.0
    %217 = vmatprep.subr.mxu0 0.0
    %218 = vmatpush1.xpose.msra.mxu0 0.0
    %219 = vmatprep.subr.mxu0 0.0
    %220 = vmatpush1.xpose.msra.mxu0 0.0
    %221 = vmatprep.subr.mxu0 0.0
    %222 = vmatpush1.xpose.msra.mxu0 0.0
    %223 = vmatprep.subr.mxu0 0.0
    %224 = vmatpush1.xpose.msra.mxu0 0.0
    %225 = vmatprep.subr.mxu0 0.0
    %226 = vmatpush1.xpose.msra.mxu0 0.0
    %227 = vmatprep.subr.mxu0 0.0
    %228 = vmatpush1.xpose.msra.mxu0 0.0
    %229 = vmatprep.subr.mxu0 0.0
    %230 = vmatpush1.xpose.msra.mxu0 0.0
    %231 = vmatprep.subr.mxu0 0.0
    %232 = vmatpush1.xpose.msra.mxu0 0.0
    %233 = vmatprep.subr.mxu0 0.0
    %234 = vmatpush1.xpose.msra.mxu0 0.0
    %235 = vmatprep.subr.mxu0 0.0
    %236 = vmatpush1.xpose.msra.mxu0 0.0
    %237 = vmatprep.subr.mxu0 0.0
    %238 = vmatpush1.xpose.msra.mxu0 0.0
    %239 = vmatprep.subr.mxu0 0.0
    %240 = vmatpush1.xpose.msra.mxu0 0.0
    %241 = vmatprep.subr.mxu0 0.0
    %242 = vmatpush1.xpose.msra.mxu0 0.0
    %243 = vmatprep.subr.mxu0 0.0
    %244 = vmatpush1.xpose.msra.mxu0 0.0
    %245 = vmatprep.subr.mxu0 0.0
    %246 = vmatpush1.xpose.msra.mxu0 0.0
    %247 = vmatprep.subr.mxu0 0.0
    %248 = vmatpush1.xpose.msra.mxu0 0.0
    %249 = vmatprep.subr.mxu0 0.0
    %250 = vmatpush1.xpose.msra.mxu0 0.0
    %251 = vmatprep.subr.mxu0 0.0
    %252 = vmatpush1.xpose.msra.mxu0 0.0
    %253 = vmatprep.subr.mxu0 0.0
    %254 = vmatpush1.xpose.msra.mxu0 0.0
    %255 = vmatprep.subr.mxu0 0.0
    %256 = vmatpush1.xpose.msra.mxu0 0.0
    %257 = vmatprep.subr.mxu0 0.0
    %258 = vmatpush1.xpose.msra.mxu0 0.0
    %259 = vmatprep.subr.mxu0 0.0
    %260 = vmatpush1.xpose.msra.mxu0 0.0
    %261 = vmatprep.mubr.f32.mxu0 0.0
    %262 = vmatmul.mubr.f32.gmra.mrb[0].mxu0 %v193
    %v263 = vpop.f32.mrb[0].mxu0
    %v264 = vadd.f32 %v182, %v263
    %v265 = vpop.f32.mrb[0].mxu0
    %266 = vdwg.mxu0
    %268 = vrot.lane.b32.xlu0 %v171, 80
    %v269 = vpop.permute.xlu0 %268
    %v270 = vsel %vm192, %v171, 0
    %v272 = vsel %vm192, %v269, 0
    %274 = vmatprep.subr.mxu0 0.0
    %275 = vmatpush1.xpose.msra.mxu0 %v272
    %276 = vmatprep.subr.mxu0 0.0
    %277 = vmatpush1.xpose.msra.mxu0 0.0
    %278 = vmatprep.subr.mxu0 0.0
    %279 = vmatpush1.xpose.msra.mxu0 0.0
    %280 = vmatprep.subr.mxu0 0.0
    %281 = vmatpush1.xpose.msra.mxu0 0.0
    %282 = vmatprep.subr.mxu0 0.0
    %283 = vmatpush1.xpose.msra.mxu0 0.0
    %284 = vmatprep.subr.mxu0 0.0
    %285 = vmatpush1.xpose.msra.mxu0 0.0
    %286 = vmatprep.subr.mxu0 0.0
    %287 = vmatpush1.xpose.msra.mxu0 0.0
    %288 = vmatprep.subr.mxu0 0.0
    %289 = vmatpush1.xpose.msra.mxu0 0.0
    %290 = vmatprep.subr.mxu0 0.0
    %291 = vmatpush1.xpose.msra.mxu0 0.0
    %292 = vmatprep.subr.mxu0 0.0
    %293 = vmatpush1.xpose.msra.mxu0 0.0
    %294 = vmatprep.subr.mxu0 0.0
    %295 = vmatpush1.xpose.msra.mxu0 0.0
    %296 = vmatprep.subr.mxu0 0.0
    %297 = vmatpush1.xpose.msra.mxu0 0.0
    %298 = vmatprep.subr.mxu0 0.0
    %299 = vmatpush1.xpose.msra.mxu0 0.0
    %300 = vmatprep.subr.mxu0 0.0
    %301 = vmatpush1.xpose.msra.mxu0 0.0
    %302 = vmatprep.subr.mxu0 0.0
    %303 = vmatpush1.xpose.msra.mxu0 0.0
    %304 = vmatprep.subr.mxu0 0.0
    %305 = vmatpush1.xpose.msra.mxu0 0.0
    %306 = vmatprep.subr.mxu0 0.0
    %307 = vmatpush1.xpose.msra.mxu0 0.0
    %308 = vmatprep.subr.mxu0 0.0
    %309 = vmatpush1.xpose.msra.mxu0 0.0
    %310 = vmatprep.subr.mxu0 0.0
    %311 = vmatpush1.xpose.msra.mxu0 0.0
    %312 = vmatprep.subr.mxu0 0.0
    %313 = vmatpush1.xpose.msra.mxu0 0.0
    %314 = vmatprep.subr.mxu0 0.0
    %315 = vmatpush1.xpose.msra.mxu0 0.0
    %316 = vmatprep.subr.mxu0 0.0
    %317 = vmatpush1.xpose.msra.mxu0 0.0
    %318 = vmatprep.subr.mxu0 0.0
    %319 = vmatpush1.xpose.msra.mxu0 0.0
    %320 = vmatprep.subr.mxu0 0.0
    %321 = vmatpush1.xpose.msra.mxu0 0.0
    %322 = vmatprep.subr.mxu0 0.0
    %323 = vmatpush1.xpose.msra.mxu0 0.0
    %324 = vmatprep.subr.mxu0 0.0
    %325 = vmatpush1.xpose.msra.mxu0 0.0
    %326 = vmatprep.subr.mxu0 0.0
    %327 = vmatpush1.xpose.msra.mxu0 0.0
    %328 = vmatprep.subr.mxu0 0.0
    %329 = vmatpush1.xpose.msra.mxu0 0.0
    %330 = vmatprep.subr.mxu0 0.0
    %331 = vmatpush1.xpose.msra.mxu0 0.0
    %332 = vmatprep.subr.mxu0 0.0
    %333 = vmatpush1.xpose.msra.mxu0 0.0
    %334 = vmatprep.subr.mxu0 0.0
    %335 = vmatpush1.xpose.msra.mxu0 0.0
    %336 = vmatprep.subr.mxu0 0.0
    %337 = vmatpush1.xpose.msra.mxu0 0.0
    %338 = vmatprep.mubr.f32.mxu0 0.0
    %339 = vmatmul.mubr.f32.gmra.mrb[0].mxu0 %v270
    %v340 = vpop.f32.mrb[0].mxu0
    %v341 = vadd.f32 %v186, %v340
    %v342 = vpop.f32.mrb[0].mxu0
    %343 = vdwg.mxu0
    %vm344 = vcmask 64512
    %v345 = vsel %vm344, %v264, -inf
    %346 = vmax.xlane.f32.xlu0 %v345
    %v347 = vpop.xlane.xlu0 %346
    %v348 = vsel %vm344, %v341, -inf
    %349 = vmax.xlane.f32.xlu0 %v348
    %v350 = vpop.xlane.xlu0 %349
    %v351 = vsub.f32 %v264, %v347
    %v352 = vsub.f32 %v341, %v350
    %v353 = vmul.f32 %v351, 1.442695
    %v354 = vpow.pop %v353
    %v355 = vmul.f32 %v352, 1.442695
    %v356 = vpow.pop %v355
    %v357 = vsel %vm344, %v354, 0.0
    %358 = vadd.xlane.f32.xlu0 %v357
    %v359 = vpop.xlane.xlu0 %358
    %v360 = vsel %vm344, %v356, 0.0
    %361 = vadd.xlane.f32.xlu0 %v360
    %v362 = vpop.xlane.xlu0 %361
    %v363 = vrcp.pop %v359
    %v364 = vrcp.pop %v362
    %v365 = vmul.f32 %v354, %v363
    %v366 = vmul.f32 %v356, %v364
    %367 = vrot.lane.b32.xlu0 %v165, 32
    %v368 = vpop.permute.xlu0 %367
    %v371 = vsel %vm344, %v365, 0
    %373 = vmatprep.subr.mxu0 0.0
    %374 = vmatpush1.msra.mxu0 %v368
    %375 = vmatprep.subr.mxu0 0.0
    %376 = vmatpush1.msra.mxu0 0.0
    %377 = vmatprep.subr.mxu0 0.0
    %378 = vmatpush1.msra.mxu0 0.0
    %379 = vmatprep.subr.mxu0 0.0
    %380 = vmatpush1.msra.mxu0 0.0
    %381 = vmatprep.subr.mxu0 0.0
    %382 = vmatpush1.msra.mxu0 0.0
    %383 = vmatprep.subr.mxu0 0.0
    %384 = vmatpush1.msra.mxu0 0.0
    %385 = vmatprep.subr.mxu0 0.0
    %386 = vmatpush1.msra.mxu0 0.0
    %387 = vmatprep.subr.mxu0 0.0
    %388 = vmatpush1.msra.mxu0 0.0
    %389 = vmatprep.subr.mxu0 0.0
    %390 = vmatpush1.msra.mxu0 0.0
    %391 = vmatprep.subr.mxu0 0.0
    %392 = vmatpush1.msra.mxu0 0.0
    %393 = vmatprep.subr.mxu0 0.0
    %394 = vmatpush1.msra.mxu0 0.0
    %395 = vmatprep.subr.mxu0 0.0
    %396 = vmatpush1.msra.mxu0 0.0
    %397 = vmatprep.subr.mxu0 0.0
    %398 = vmatpush1.msra.mxu0 0.0
    %399 = vmatprep.subr.mxu0 0.0
    %400 = vmatpush1.msra.mxu0 0.0
    %401 = vmatprep.subr.mxu0 0.0
    %402 = vmatpush1.msra.mxu0 0.0
    %403 = vmatprep.subr.mxu0 0.0
    %404 = vmatpush1.msra.mxu0 0.0
    %405 = vmatprep.subr.mxu0 0.0
    %406 = vmatpush1.msra.mxu0 0.0
    %407 = vmatprep.subr.mxu0 0.0
    %408 = vmatpush1.msra.mxu0 0.0
    %409 = vmatprep.subr.mxu0 0.0
    %410 = vmatpush1.msra.mxu0 0.0
    %411 = vmatprep.subr.mxu0 0.0
    %412 = vmatpush1.msra.mxu0 0.0
    %413 = vmatprep.subr.mxu0 0.0
    %414 = vmatpush1.msra.mxu0 0.0
    %415 = vmatprep.subr.mxu0 0.0
    %416 = vmatpush1.msra.mxu0 0.0
    %417 = vmatprep.subr.mxu0 0.0
    %418 = vmatpush1.msra.mxu0 0.0
    %419 = vmatprep.subr.mxu0 0.0
    %420 = vmatpush1.msra.mxu0 0.0
    %421 = vmatprep.subr.mxu0 0.0
    %422 = vmatpush1.msra.mxu0 0.0
    %423 = vmatprep.subr.mxu0 0.0
    %424 = vmatpush1.msra.mxu0 0.0
    %425 = vmatprep.subr.mxu0 0.0
    %426 = vmatpush1.msra.mxu0 0.0
    %427 = vmatprep.subr.mxu0 0.0
    %428 = vmatpush1.msra.mxu0 0.0
    %429 = vmatprep.subr.mxu0 0.0
    %430 = vmatpush1.msra.mxu0 0.0
    %431 = vmatprep.subr.mxu0 0.0
    %432 = vmatpush1.msra.mxu0 0.0
    %433 = vmatprep.subr.mxu0 0.0
    %434 = vmatpush1.msra.mxu0 0.0
    %435 = vmatprep.subr.mxu0 0.0
    %436 = vmatpush1.msra.mxu0 0.0
    %437 = vmatprep.mubr.f32.mxu0 0.0
    %438 = vmatmul.mubr.f32.gmra.mrb[0].mxu0 %v371
    %v439 = vpop.f32.mrb[0].mxu0
    %v440 = vadd.f32 0.0, %v439
    %v441 = vpop.f32.mrb[0].mxu0
    %442 = vdwg.mxu0
    %443 = vrot.lane.b32.xlu0 %v171, 32
    %v444 = vpop.permute.xlu0 %443
    %v447 = vsel %vm344, %v366, 0
    %449 = vmatprep.subr.mxu0 0.0
    %450 = vmatpush1.msra.mxu0 %v444
    %451 = vmatprep.subr.mxu0 0.0
    %452 = vmatpush1.msra.mxu0 0.0
    %453 = vmatprep.subr.mxu0 0.0
    %454 = vmatpush1.msra.mxu0 0.0
    %455 = vmatprep.subr.mxu0 0.0
    %456 = vmatpush1.msra.mxu0 0.0
    %457 = vmatprep.subr.mxu0 0.0
    %458 = vmatpush1.msra.mxu0 0.0
    %459 = vmatprep.subr.mxu0 0.0
    %460 = vmatpush1.msra.mxu0 0.0
    %461 = vmatprep.subr.mxu0 0.0
    %462 = vmatpush1.msra.mxu0 0.0
    %463 = vmatprep.subr.mxu0 0.0
    %464 = vmatpush1.msra.mxu0 0.0
    %465 = vmatprep.subr.mxu0 0.0
    %466 = vmatpush1.msra.mxu0 0.0
    %467 = vmatprep.subr.mxu0 0.0
    %468 = vmatpush1.msra.mxu0 0.0
    %469 = vmatprep.subr.mxu0 0.0
    %470 = vmatpush1.msra.mxu0 0.0
    %471 = vmatprep.subr.mxu0 0.0
    %472 = vmatpush1.msra.mxu0 0.0
    %473 = vmatprep.subr.mxu0 0.0
    %474 = vmatpush1.msra.mxu0 0.0
    %475 = vmatprep.subr.mxu0 0.0
    %476 = vmatpush1.msra.mxu0 0.0
    %477 = vmatprep.subr.mxu0 0.0
    %478 = vmatpush1.msra.mxu0 0.0
    %479 = vmatprep.subr.mxu0 0.0
    %480 = vmatpush1.msra.mxu0 0.0
    %481 = vmatprep.subr.mxu0 0.0
    %482 = vmatpush1.msra.mxu0 0.0
    %483 = vmatprep.subr.mxu0 0.0
    %484 = vmatpush1.msra.mxu0 0.0
    %485 = vmatprep.subr.mxu0 0.0
    %486 = vmatpush1.msra.mxu0 0.0
    %487 = vmatprep.subr.mxu0 0.0
    %488 = vmatpush1.msra.mxu0 0.0
    %489 = vmatprep.subr.mxu0 0.0
    %490 = vmatpush1.msra.mxu0 0.0
    %491 = vmatprep.subr.mxu0 0.0
    %492 = vmatpush1.msra.mxu0 0.0
    %493 = vmatprep.subr.mxu0 0.0
    %494 = vmatpush1.msra.mxu0 0.0
    %495 = vmatprep.subr.mxu0 0.0
    %496 = vmatpush1.msra.mxu0 0.0
    %497 = vmatprep.subr.mxu0 0.0
    %498 = vmatpush1.msra.mxu0 0.0
    %499 = vmatprep.subr.mxu0 0.0
    %500 = vmatpush1.msra.mxu0 0.0
    %501 = vmatprep.subr.mxu0 0.0
    %502 = vmatpush1.msra.mxu0 0.0
    %503 = vmatprep.subr.mxu0 0.0
    %504 = vmatpush1.msra.mxu0 0.0
    %505 = vmatprep.subr.mxu0 0.0
    %506 = vmatpush1.msra.mxu0 0.0
    %507 = vmatprep.subr.mxu0 0.0
    %508 = vmatpush1.msra.mxu0 0.0
    %509 = vmatprep.subr.mxu0 0.0
    %510 = vmatpush1.msra.mxu0 0.0
    %511 = vmatprep.subr.mxu0 0.0
    %512 = vmatpush1.msra.mxu0 0.0
    %513 = vmatprep.mubr.f32.mxu0 0.0
    %514 = vmatmul.mubr.f32.gmra.mrb[0].mxu0 %v447
    %v515 = vpop.f32.mrb[0].mxu0
    %v516 = vadd.f32 0.0, %v515
    %v517 = vpop.f32.mrb[0].mxu0
    %518 = vdwg.mxu0
    %v519 = vld [vmem:[#allocation7] sm:$0xff]
    %v520 = vld [vmem:[#allocation7 + $0x8] sm:$0xff]
    %521 = vrot.lane.b32.xlu0 %v165, 112
    %v522 = vpop.permute.xlu0 %521
    %523 = vrot.lane.b32.xlu0 %v165, 64
    %v524 = vpop.permute.xlu0 %523
    %v525 = vsel %vm192, %v522, 0
    %v527 = vsel %vm192, %v524, 0
    %529 = vmatprep.subr.mxu0 0.0
    %530 = vmatpush1.xpose.msra.mxu0 %v527
    %531 = vmatprep.subr.mxu0 0.0
    %532 = vmatpush1.xpose.msra.mxu0 0.0
    %533 = vmatprep.subr.mxu0 0.0
    %534 = vmatpush1.xpose.msra.mxu0 0.0
    %535 = vmatprep.subr.mxu0 0.0
    %536 = vmatpush1.xpose.msra.mxu0 0.0
    %537 = vmatprep.subr.mxu0 0.0
    %538 = vmatpush1.xpose.msra.mxu0 0.0
    %539 = vmatprep.subr.mxu0 0.0
    %540 = vmatpush1.xpose.msra.mxu0 0.0
    %541 = vmatprep.subr.mxu0 0.0
    %542 = vmatpush1.xpose.msra.mxu0 0.0
    %543 = vmatprep.subr.mxu0 0.0
    %544 = vmatpush1.xpose.msra.mxu0 0.0
    %545 = vmatprep.subr.mxu0 0.0
    %546 = vmatpush1.xpose.msra.mxu0 0.0
    %547 = vmatprep.subr.mxu0 0.0
    %548 = vmatpush1.xpose.msra.mxu0 0.0
    %549 = vmatprep.subr.mxu0 0.0
    %550 = vmatpush1.xpose.msra.mxu0 0.0
    %551 = vmatprep.subr.mxu0 0.0
    %552 = vmatpush1.xpose.msra.mxu0 0.0
    %553 = vmatprep.subr.mxu0 0.0
    %554 = vmatpush1.xpose.msra.mxu0 0.0
    %555 = vmatprep.subr.mxu0 0.0
    %556 = vmatpush1.xpose.msra.mxu0 0.0
    %557 = vmatprep.subr.mxu0 0.0
    %558 = vmatpush1.xpose.msra.mxu0 0.0
    %559 = vmatprep.subr.mxu0 0.0
    %560 = vmatpush1.xpose.msra.mxu0 0.0
    %561 = vmatprep.subr.mxu0 0.0
    %562 = vmatpush1.xpose.msra.mxu0 0.0
    %563 = vmatprep.subr.mxu0 0.0
    %564 = vmatpush1.xpose.msra.mxu0 0.0
    %565 = vmatprep.subr.mxu0 0.0
    %566 = vmatpush1.xpose.msra.mxu0 0.0
    %567 = vmatprep.subr.mxu0 0.0
    %568 = vmatpush1.xpose.msra.mxu0 0.0
    %569 = vmatprep.subr.mxu0 0.0
    %570 = vmatpush1.xpose.msra.mxu0 0.0
    %571 = vmatprep.subr.mxu0 0.0
    %572 = vmatpush1.xpose.msra.mxu0 0.0
    %573 = vmatprep.subr.mxu0 0.0
    %574 = vmatpush1.xpose.msra.mxu0 0.0
    %575 = vmatprep.subr.mxu0 0.0
    %576 = vmatpush1.xpose.msra.mxu0 0.0
    %577 = vmatprep.subr.mxu0 0.0
    %578 = vmatpush1.xpose.msra.mxu0 0.0
    %579 = vmatprep.subr.mxu0 0.0
    %580 = vmatpush1.xpose.msra.mxu0 0.0
    %581 = vmatprep.subr.mxu0 0.0
    %582 = vmatpush1.xpose.msra.mxu0 0.0
    %583 = vmatprep.subr.mxu0 0.0
    %584 = vmatpush1.xpose.msra.mxu0 0.0
    %585 = vmatprep.subr.mxu0 0.0
    %586 = vmatpush1.xpose.msra.mxu0 0.0
    %587 = vmatprep.subr.mxu0 0.0
    %588 = vmatpush1.xpose.msra.mxu0 0.0
    %589 = vmatprep.subr.mxu0 0.0
    %590 = vmatpush1.xpose.msra.mxu0 0.0
    %591 = vmatprep.subr.mxu0 0.0
    %592 = vmatpush1.xpose.msra.mxu0 0.0
    %593 = vmatprep.mubr.f32.mxu0 0.0
    %594 = vmatmul.mubr.f32.gmra.mrb[0].mxu0 %v525
    %v595 = vpop.f32.mrb[0].mxu0
    %v596 = vadd.f32 %v182, %v595
    %v597 = vpop.f32.mrb[0].mxu0
    %598 = vdwg.mxu0
    %599 = vrot.lane.b32.xlu0 %v171, 112
    %v600 = vpop.permute.xlu0 %599
    %601 = vrot.lane.b32.xlu0 %v171, 64
    %v602 = vpop.permute.xlu0 %601
    %v603 = vsel %vm192, %v600, 0
    %v605 = vsel %vm192, %v602, 0
    %607 = vmatprep.subr.mxu0 0.0
    %608 = vmatpush1.xpose.msra.mxu0 %v605
    %609 = vmatprep.subr.mxu0 0.0
    %610 = vmatpush1.xpose.msra.mxu0 0.0
    %611 = vmatprep.subr.mxu0 0.0
    %612 = vmatpush1.xpose.msra.mxu0 0.0
    %613 = vmatprep.subr.mxu0 0.0
    %614 = vmatpush1.xpose.msra.mxu0 0.0
    %615 = vmatprep.subr.mxu0 0.0
    %616 = vmatpush1.xpose.msra.mxu0 0.0
    %617 = vmatprep.subr.mxu0 0.0
    %618 = vmatpush1.xpose.msra.mxu0 0.0
    %619 = vmatprep.subr.mxu0 0.0
    %620 = vmatpush1.xpose.msra.mxu0 0.0
    %621 = vmatprep.subr.mxu0 0.0
    %622 = vmatpush1.xpose.msra.mxu0 0.0
    %623 = vmatprep.subr.mxu0 0.0
    %624 = vmatpush1.xpose.msra.mxu0 0.0
    %625 = vmatprep.subr.mxu0 0.0
    %626 = vmatpush1.xpose.msra.mxu0 0.0
    %627 = vmatprep.subr.mxu0 0.0
    %628 = vmatpush1.xpose.msra.mxu0 0.0
    %629 = vmatprep.subr.mxu0 0.0
    %630 = vmatpush1.xpose.msra.mxu0 0.0
    %631 = vmatprep.subr.mxu0 0.0
    %632 = vmatpush1.xpose.msra.mxu0 0.0
    %633 = vmatprep.subr.mxu0 0.0
    %634 = vmatpush1.xpose.msra.mxu0 0.0
    %635 = vmatprep.subr.mxu0 0.0
    %636 = vmatpush1.xpose.msra.mxu0 0.0
    %637 = vmatprep.subr.mxu0 0.0
    %638 = vmatpush1.xpose.msra.mxu0 0.0
    %639 = vmatprep.subr.mxu0 0.0
    %640 = vmatpush1.xpose.msra.mxu0 0.0
    %641 = vmatprep.subr.mxu0 0.0
    %642 = vmatpush1.xpose.msra.mxu0 0.0
    %643 = vmatprep.subr.mxu0 0.0
    %644 = vmatpush1.xpose.msra.mxu0 0.0
    %645 = vmatprep.subr.mxu0 0.0
    %646 = vmatpush1.xpose.msra.mxu0 0.0
    %647 = vmatprep.subr.mxu0 0.0
    %648 = vmatpush1.xpose.msra.mxu0 0.0
    %649 = vmatprep.subr.mxu0 0.0
    %650 = vmatpush1.xpose.msra.mxu0 0.0
    %651 = vmatprep.subr.mxu0 0.0
    %652 = vmatpush1.xpose.msra.mxu0 0.0
    %653 = vmatprep.subr.mxu0 0.0
    %654 = vmatpush1.xpose.msra.mxu0 0.0
    %655 = vmatprep.subr.mxu0 0.0
    %656 = vmatpush1.xpose.msra.mxu0 0.0
    %657 = vmatprep.subr.mxu0 0.0
    %658 = vmatpush1.xpose.msra.mxu0 0.0
    %659 = vmatprep.subr.mxu0 0.0
    %660 = vmatpush1.xpose.msra.mxu0 0.0
    %661 = vmatprep.subr.mxu0 0.0
    %662 = vmatpush1.xpose.msra.mxu0 0.0
    %663 = vmatprep.subr.mxu0 0.0
    %664 = vmatpush1.xpose.msra.mxu0 0.0
    %665 = vmatprep.subr.mxu0 0.0
    %666 = vmatpush1.xpose.msra.mxu0 0.0
    %667 = vmatprep.subr.mxu0 0.0
    %668 = vmatpush1.xpose.msra.mxu0 0.0
    %669 = vmatprep.subr.mxu0 0.0
    %670 = vmatpush1.xpose.msra.mxu0 0.0
    %671 = vmatprep.mubr.f32.mxu0 0.0
    %672 = vmatmul.mubr.f32.gmra.mrb[0].mxu0 %v603
    %v673 = vpop.f32.mrb[0].mxu0
    %v674 = vadd.f32 %v186, %v673
    %v675 = vpop.f32.mrb[0].mxu0
    %676 = vdwg.mxu0
    %v677 = vsel %vm344, %v596, -inf
    %678 = vmax.xlane.f32.xlu0 %v677
    %v679 = vpop.xlane.xlu0 %678
    %v680 = vsel %vm344, %v674, -inf
    %681 = vmax.xlane.f32.xlu0 %v680
    %v682 = vpop.xlane.xlu0 %681
    %v683 = vsub.f32 %v596, %v679
    %v684 = vsub.f32 %v674, %v682
    %v685 = vmul.f32 %v683, 1.442695
    %v686 = vpow.pop %v685
    %v687 = vmul.f32 %v684, 1.442695
    %v688 = vpow.pop %v687
    %v689 = vsel %vm344, %v686, 0.0
    %690 = vadd.xlane.f32.xlu0 %v689
    %v691 = vpop.xlane.xlu0 %690
    %v692 = vsel %vm344, %v688, 0.0
    %693 = vadd.xlane.f32.xlu0 %v692
    %v694 = vpop.xlane.xlu0 %693
    %v695 = vrcp.pop %v691
    %v696 = vrcp.pop %v694
    %v697 = vmul.f32 %v686, %v695
    %v698 = vmul.f32 %v688, %v696
    %699 = vrot.lane.b32.xlu0 %v165, 16
    %v700 = vpop.permute.xlu0 %699
    %v703 = vsel %vm344, %v697, 0
    %705 = vmatprep.subr.mxu0 0.0
    %706 = vmatpush1.msra.mxu0 %v700
    %707 = vmatprep.subr.mxu0 0.0
    %708 = vmatpush1.msra.mxu0 0.0
    %709 = vmatprep.subr.mxu0 0.0
    %710 = vmatpush1.msra.mxu0 0.0
    %711 = vmatprep.subr.mxu0 0.0
    %712 = vmatpush1.msra.mxu0 0.0
    %713 = vmatprep.subr.mxu0 0.0
    %714 = vmatpush1.msra.mxu0 0.0
    %715 = vmatprep.subr.mxu0 0.0
    %716 = vmatpush1.msra.mxu0 0.0
    %717 = vmatprep.subr.mxu0 0.0
    %718 = vmatpush1.msra.mxu0 0.0
    %719 = vmatprep.subr.mxu0 0.0
    %720 = vmatpush1.msra.mxu0 0.0
    %721 = vmatprep.subr.mxu0 0.0
    %722 = vmatpush1.msra.mxu0 0.0
    %723 = vmatprep.subr.mxu0 0.0
    %724 = vmatpush1.msra.mxu0 0.0
    %725 = vmatprep.subr.mxu0 0.0
    %726 = vmatpush1.msra.mxu0 0.0
    %727 = vmatprep.subr.mxu0 0.0
    %728 = vmatpush1.msra.mxu0 0.0
    %729 = vmatprep.subr.mxu0 0.0
    %730 = vmatpush1.msra.mxu0 0.0
    %731 = vmatprep.subr.mxu0 0.0
    %732 = vmatpush1.msra.mxu0 0.0
    %733 = vmatprep.subr.mxu0 0.0
    %734 = vmatpush1.msra.mxu0 0.0
    %735 = vmatprep.subr.mxu0 0.0
    %736 = vmatpush1.msra.mxu0 0.0
    %737 = vmatprep.subr.mxu0 0.0
    %738 = vmatpush1.msra.mxu0 0.0
    %739 = vmatprep.subr.mxu0 0.0
    %740 = vmatpush1.msra.mxu0 0.0
    %741 = vmatprep.subr.mxu0 0.0
    %742 = vmatpush1.msra.mxu0 0.0
    %743 = vmatprep.subr.mxu0 0.0
    %744 = vmatpush1.msra.mxu0 0.0
    %745 = vmatprep.subr.mxu0 0.0
    %746 = vmatpush1.msra.mxu0 0.0
    %747 = vmatprep.subr.mxu0 0.0
    %748 = vmatpush1.msra.mxu0 0.0
    %749 = vmatprep.subr.mxu0 0.0
    %750 = vmatpush1.msra.mxu0 0.0
    %751 = vmatprep.subr.mxu0 0.0
    %752 = vmatpush1.msra.mxu0 0.0
    %753 = vmatprep.subr.mxu0 0.0
    %754 = vmatpush1.msra.mxu0 0.0
    %755 = vmatprep.subr.mxu0 0.0
    %756 = vmatpush1.msra.mxu0 0.0
    %757 = vmatprep.subr.mxu0 0.0
    %758 = vmatpush1.msra.mxu0 0.0
    %759 = vmatprep.subr.mxu0 0.0
    %760 = vmatpush1.msra.mxu0 0.0
    %761 = vmatprep.subr.mxu0 0.0
    %762 = vmatpush1.msra.mxu0 0.0
    %763 = vmatprep.subr.mxu0 0.0
    %764 = vmatpush1.msra.mxu0 0.0
    %765 = vmatprep.subr.mxu0 0.0
    %766 = vmatpush1.msra.mxu0 0.0
    %767 = vmatprep.subr.mxu0 0.0
    %768 = vmatpush1.msra.mxu0 0.0
    %769 = vmatprep.mubr.f32.mxu0 0.0
    %770 = vmatmul.mubr.f32.gmra.mrb[0].mxu0 %v703
    %v771 = vpop.f32.mrb[0].mxu0
    %v772 = vadd.f32 0.0, %v771
    %v773 = vpop.f32.mrb[0].mxu0
    %774 = vdwg.mxu0
    %775 = vrot.lane.b32.xlu0 %v171, 16
    %v776 = vpop.permute.xlu0 %775
    %v779 = vsel %vm344, %v698, 0
    %781 = vmatprep.subr.mxu0 0.0
    %782 = vmatpush1.msra.mxu0 %v776
    %783 = vmatprep.subr.mxu0 0.0
    %784 = vmatpush1.msra.mxu0 0.0
    %785 = vmatprep.subr.mxu0 0.0
    %786 = vmatpush1.msra.mxu0 0.0
    %787 = vmatprep.subr.mxu0 0.0
    %788 = vmatpush1.msra.mxu0 0.0
    %789 = vmatprep.subr.mxu0 0.0
    %790 = vmatpush1.msra.mxu0 0.0
    %791 = vmatprep.subr.mxu0 0.0
    %792 = vmatpush1.msra.mxu0 0.0
    %793 = vmatprep.subr.mxu0 0.0
    %794 = vmatpush1.msra.mxu0 0.0
    %795 = vmatprep.subr.mxu0 0.0
    %796 = vmatpush1.msra.mxu0 0.0
    %797 = vmatprep.subr.mxu0 0.0
    %798 = vmatpush1.msra.mxu0 0.0
    %799 = vmatprep.subr.mxu0 0.0
    %800 = vmatpush1.msra.mxu0 0.0
    %801 = vmatprep.subr.mxu0 0.0
    %802 = vmatpush1.msra.mxu0 0.0
    %803 = vmatprep.subr.mxu0 0.0
    %804 = vmatpush1.msra.mxu0 0.0
    %805 = vmatprep.subr.mxu0 0.0
    %806 = vmatpush1.msra.mxu0 0.0
    %807 = vmatprep.subr.mxu0 0.0
    %808 = vmatpush1.msra.mxu0 0.0
    %809 = vmatprep.subr.mxu0 0.0
    %810 = vmatpush1.msra.mxu0 0.0
    %811 = vmatprep.subr.mxu0 0.0
    %812 = vmatpush1.msra.mxu0 0.0
    %813 = vmatprep.subr.mxu0 0.0
    %814 = vmatpush1.msra.mxu0 0.0
    %815 = vmatprep.subr.mxu0 0.0
    %816 = vmatpush1.msra.mxu0 0.0
    %817 = vmatprep.subr.mxu0 0.0
    %818 = vmatpush1.msra.mxu0 0.0
    %819 = vmatprep.subr.mxu0 0.0
    %820 = vmatpush1.msra.mxu0 0.0
    %821 = vmatprep.subr.mxu0 0.0
    %822 = vmatpush1.msra.mxu0 0.0
    %823 = vmatprep.subr.mxu0 0.0
    %824 = vmatpush1.msra.mxu0 0.0
    %825 = vmatprep.subr.mxu0 0.0
    %826 = vmatpush1.msra.mxu0 0.0
    %827 = vmatprep.subr.mxu0 0.0
    %828 = vmatpush1.msra.mxu0 0.0
    %829 = vmatprep.subr.mxu0 0.0
    %830 = vmatpush1.msra.mxu0 0.0
    %831 = vmatprep.subr.mxu0 0.0
    %832 = vmatpush1.msra.mxu0 0.0
    %833 = vmatprep.subr.mxu0 0.0
    %834 = vmatpush1.msra.mxu0 0.0
    %835 = vmatprep.subr.mxu0 0.0
    %836 = vmatpush1.msra.mxu0 0.0
    %837 = vmatprep.subr.mxu0 0.0
    %838 = vmatpush1.msra.mxu0 0.0
    %839 = vmatprep.subr.mxu0 0.0
    %840 = vmatpush1.msra.mxu0 0.0
    %841 = vmatprep.subr.mxu0 0.0
    %842 = vmatpush1.msra.mxu0 0.0
    %843 = vmatprep.subr.mxu0 0.0
    %844 = vmatpush1.msra.mxu0 0.0
    %845 = vmatprep.mubr.f32.mxu0 0.0
    %846 = vmatmul.mubr.f32.gmra.mrb[0].mxu0 %v779
    %v847 = vpop.f32.mrb[0].mxu0
    %v848 = vadd.f32 0.0, %v847
    %v849 = vpop.f32.mrb[0].mxu0
    %850 = vdwg.mxu0
    %s851 = scalar_lea.vmem [#allocation7], 16
    %v852 = vld [vmem:[%s851] sm:$0xff]
    %v853 = vld [vmem:[%s851 + $0x8] sm:$0xff]
    %v855 = vsel %vm192, %v772, 0
    %v858 = vsel %vm192, %v848, 0
    %860 = vmatprep.subr.mxu0 0.0
    %861 = vmatpush1.msra.mxu0 %v852
    %862 = vmatprep.subr.mxu0 0.0
    %863 = vmatpush1.msra.mxu0 %v853
    %864 = vmatprep.subr.mxu0 0.0
    %865 = vmatpush1.msra.mxu0 0.0
    %866 = vmatprep.subr.mxu0 0.0
    %867 = vmatpush1.msra.mxu0 0.0
    %868 = vmatprep.subr.mxu0 0.0
    %869 = vmatpush1.msra.mxu0 0.0
    %870 = vmatprep.subr.mxu0 0.0
    %871 = vmatpush1.msra.mxu0 0.0
    %872 = vmatprep.subr.mxu0 0.0
    %873 = vmatpush1.msra.mxu0 0.0
    %874 = vmatprep.subr.mxu0 0.0
    %875 = vmatpush1.msra.mxu0 0.0
    %876 = vmatprep.subr.mxu0 0.0
    %877 = vmatpush1.msra.mxu0 0.0
    %878 = vmatprep.subr.mxu0 0.0
    %879 = vmatpush1.msra.mxu0 0.0
    %880 = vmatprep.subr.mxu0 0.0
    %881 = vmatpush1.msra.mxu0 0.0
    %882 = vmatprep.subr.mxu0 0.0
    %883 = vmatpush1.msra.mxu0 0.0
    %884 = vmatprep.subr.mxu0 0.0
    %885 = vmatpush1.msra.mxu0 0.0
    %886 = vmatprep.subr.mxu0 0.0
    %887 = vmatpush1.msra.mxu0 0.0
    %888 = vmatprep.subr.mxu0 0.0
    %889 = vmatpush1.msra.mxu0 0.0
    %890 = vmatprep.subr.mxu0 0.0
    %891 = vmatpush1.msra.mxu0 0.0
    %892 = vmatprep.subr.mxu0 0.0
    %893 = vmatpush1.msra.mxu0 0.0
    %894 = vmatprep.subr.mxu0 0.0
    %895 = vmatpush1.msra.mxu0 0.0
    %896 = vmatprep.subr.mxu0 0.0
    %897 = vmatpush1.msra.mxu0 0.0
    %898 = vmatprep.subr.mxu0 0.0
    %899 = vmatpush1.msra.mxu0 0.0
    %900 = vmatprep.subr.mxu0 0.0
    %901 = vmatpush1.msra.mxu0 0.0
    %902 = vmatprep.subr.mxu0 0.0
    %903 = vmatpush1.msra.mxu0 0.0
    %904 = vmatprep.subr.mxu0 0.0
    %905 = vmatpush1.msra.mxu0 0.0
    %906 = vmatprep.subr.mxu0 0.0
    %907 = vmatpush1.msra.mxu0 0.0
    %908 = vmatprep.subr.mxu0 0.0
    %909 = vmatpush1.msra.mxu0 0.0
    %910 = vmatprep.subr.mxu0 0.0
    %911 = vmatpush1.msra.mxu0 0.0
    %912 = vmatprep.subr.mxu0 0.0
    %913 = vmatpush1.msra.mxu0 0.0
    %914 = vmatprep.subr.mxu0 0.0
    %915 = vmatpush1.msra.mxu0 0.0
    %916 = vmatprep.subr.mxu0 0.0
    %917 = vmatpush1.msra.mxu0 0.0
    %918 = vmatprep.subr.mxu0 0.0
    %919 = vmatpush1.msra.mxu0 0.0
    %920 = vmatprep.subr.mxu0 0.0
    %921 = vmatpush1.msra.mxu0 0.0
    %922 = vmatprep.subr.mxu0 0.0
    %923 = vmatpush1.msra.mxu0 0.0
    %924 = vmatprep.mubr.f32.mxu0 0.0
    %925 = vmatmul.mubr.f32.gmra.mrb[0].mxu0 %v855
    %v926 = vpop.f32.mrb[0].mxu0
    %v927 = vadd.f32 0.0, %v926
    %v928 = vpop.f32.mrb[0].mxu0
    %929 = vmatprep.mubr.f32.mxu0 0.0
    %930 = vmatmul.mubr.f32.gmra.mrb[0].mxu0 %v858
    %v931 = vpop.f32.mrb[0].mxu0
    %v932 = vadd.f32 0.0, %v931
    %v933 = vpop.f32.mrb[0].mxu0
    %934 = vdwg.mxu0
    %v936 = vsel %vm192, %v440, 0
    %v939 = vsel %vm192, %v516, 0
    %941 = vmatprep.subr.mxu0 0.0
    %942 = vmatpush1.msra.mxu0 %v519
    %943 = vmatprep.subr.mxu0 0.0
    %944 = vmatpush1.msra.mxu0 %v520
    %945 = vmatprep.subr.mxu0 0.0
    %946 = vmatpush1.msra.mxu0 0.0
    %947 = vmatprep.subr.mxu0 0.0
    %948 = vmatpush1.msra.mxu0 0.0
    %949 = vmatprep.subr.mxu0 0.0
    %950 = vmatpush1.msra.mxu0 0.0
    %951 = vmatprep.subr.mxu0 0.0
    %952 = vmatpush1.msra.mxu0 0.0
    %953 = vmatprep.subr.mxu0 0.0
    %954 = vmatpush1.msra.mxu0 0.0
    %955 = vmatprep.subr.mxu0 0.0
    %956 = vmatpush1.msra.mxu0 0.0
    %957 = vmatprep.subr.mxu0 0.0
    %958 = vmatpush1.msra.mxu0 0.0
    %959 = vmatprep.subr.mxu0 0.0
    %960 = vmatpush1.msra.mxu0 0.0
    %961 = vmatprep.subr.mxu0 0.0
    %962 = vmatpush1.msra.mxu0 0.0
    %963 = vmatprep.subr.mxu0 0.0
    %964 = vmatpush1.msra.mxu0 0.0
    %965 = vmatprep.subr.mxu0 0.0
    %966 = vmatpush1.msra.mxu0 0.0
    %967 = vmatprep.subr.mxu0 0.0
    %968 = vmatpush1.msra.mxu0 0.0
    %969 = vmatprep.subr.mxu0 0.0
    %970 = vmatpush1.msra.mxu0 0.0
    %971 = vmatprep.subr.mxu0 0.0
    %972 = vmatpush1.msra.mxu0 0.0
    %973 = vmatprep.subr.mxu0 0.0
    %974 = vmatpush1.msra.mxu0 0.0
    %975 = vmatprep.subr.mxu0 0.0
    %976 = vmatpush1.msra.mxu0 0.0
    %977 = vmatprep.subr.mxu0 0.0
    %978 = vmatpush1.msra.mxu0 0.0
    %979 = vmatprep.subr.mxu0 0.0
    %980 = vmatpush1.msra.mxu0 0.0
    %981 = vmatprep.subr.mxu0 0.0
    %982 = vmatpush1.msra.mxu0 0.0
    %983 = vmatprep.subr.mxu0 0.0
    %984 = vmatpush1.msra.mxu0 0.0
    %985 = vmatprep.subr.mxu0 0.0
    %986 = vmatpush1.msra.mxu0 0.0
    %987 = vmatprep.subr.mxu0 0.0
    %988 = vmatpush1.msra.mxu0 0.0
    %989 = vmatprep.subr.mxu0 0.0
    %990 = vmatpush1.msra.mxu0 0.0
    %991 = vmatprep.subr.mxu0 0.0
    %992 = vmatpush1.msra.mxu0 0.0
    %993 = vmatprep.subr.mxu0 0.0
    %994 = vmatpush1.msra.mxu0 0.0
    %995 = vmatprep.subr.mxu0 0.0
    %996 = vmatpush1.msra.mxu0 0.0
    %997 = vmatprep.subr.mxu0 0.0
    %998 = vmatpush1.msra.mxu0 0.0
    %999 = vmatprep.subr.mxu0 0.0
    %1000 = vmatpush1.msra.mxu0 0.0
    %1001 = vmatprep.subr.mxu0 0.0
    %1002 = vmatpush1.msra.mxu0 0.0
    %1003 = vmatprep.subr.mxu0 0.0
    %1004 = vmatpush1.msra.mxu0 0.0
    %1005 = vmatprep.mubr.f32.mxu0 0.0
    %1006 = vmatmul.mubr.f32.gmra.mrb[0].mxu0 %v936
    %v1007 = vpop.f32.mrb[0].mxu0
    %v1008 = vadd.f32 %v927, %v1007
    %v1009 = vpop.f32.mrb[0].mxu0
    %1010 = vmatprep.mubr.f32.mxu0 0.0
    %1011 = vmatmul.mubr.f32.gmra.mrb[0].mxu0 %v939
    %v1012 = vpop.f32.mrb[0].mxu0
    %v1013 = vadd.f32 %v932, %v1012
    %v1014 = vpop.f32.mrb[0].mxu0
    %1015 = vdwg.mxu0
    %1016 = vrot.lane.b32.xlu0 %v165, 96
    %v1017 = vpop.permute.xlu0 %1016
    %1018 = vrot.lane.b32.xlu0 %v165, 48
    %v1019 = vpop.permute.xlu0 %1018
    %v1020 = vsel %vm192, %v1017, 0
    %v1022 = vsel %vm192, %v1019, 0
    %1024 = vmatprep.subr.mxu0 0.0
    %1025 = vmatpush1.xpose.msra.mxu0 %v1022
    %1026 = vmatprep.subr.mxu0 0.0
    %1027 = vmatpush1.xpose.msra.mxu0 0.0
    %1028 = vmatprep.subr.mxu0 0.0
    %1029 = vmatpush1.xpose.msra.mxu0 0.0
    %1030 = vmatprep.subr.mxu0 0.0
    %1031 = vmatpush1.xpose.msra.mxu0 0.0
    %1032 = vmatprep.subr.mxu0 0.0
    %1033 = vmatpush1.xpose.msra.mxu0 0.0
    %1034 = vmatprep.subr.mxu0 0.0
    %1035 = vmatpush1.xpose.msra.mxu0 0.0
    %1036 = vmatprep.subr.mxu0 0.0
    %1037 = vmatpush1.xpose.msra.mxu0 0.0
    %1038 = vmatprep.subr.mxu0 0.0
    %1039 = vmatpush1.xpose.msra.mxu0 0.0
    %1040 = vmatprep.subr.mxu0 0.0
    %1041 = vmatpush1.xpose.msra.mxu0 0.0
    %1042 = vmatprep.subr.mxu0 0.0
    %1043 = vmatpush1.xpose.msra.mxu0 0.0
    %1044 = vmatprep.subr.mxu0 0.0
    %1045 = vmatpush1.xpose.msra.mxu0 0.0
    %1046 = vmatprep.subr.mxu0 0.0
    %1047 = vmatpush1.xpose.msra.mxu0 0.0
    %1048 = vmatprep.subr.mxu0 0.0
    %1049 = vmatpush1.xpose.msra.mxu0 0.0
    %1050 = vmatprep.subr.mxu0 0.0
    %1051 = vmatpush1.xpose.msra.mxu0 0.0
    %1052 = vmatprep.subr.mxu0 0.0
    %1053 = vmatpush1.xpose.msra.mxu0 0.0
    %1054 = vmatprep.subr.mxu0 0.0
    %1055 = vmatpush1.xpose.msra.mxu0 0.0
    %1056 = vmatprep.subr.mxu0 0.0
    %1057 = vmatpush1.xpose.msra.mxu0 0.0
    %1058 = vmatprep.subr.mxu0 0.0
    %1059 = vmatpush1.xpose.msra.mxu0 0.0
    %1060 = vmatprep.subr.mxu0 0.0
    %1061 = vmatpush1.xpose.msra.mxu0 0.0
    %1062 = vmatprep.subr.mxu0 0.0
    %1063 = vmatpush1.xpose.msra.mxu0 0.0
    %1064 = vmatprep.subr.mxu0 0.0
    %1065 = vmatpush1.xpose.msra.mxu0 0.0
    %1066 = vmatprep.subr.mxu0 0.0
    %1067 = vmatpush1.xpose.msra.mxu0 0.0
    %1068 = vmatprep.subr.mxu0 0.0
    %1069 = vmatpush1.xpose.msra.mxu0 0.0
    %1070 = vmatprep.subr.mxu0 0.0
    %1071 = vmatpush1.xpose.msra.mxu0 0.0
    %1072 = vmatprep.subr.mxu0 0.0
    %1073 = vmatpush1.xpose.msra.mxu0 0.0
    %1074 = vmatprep.subr.mxu0 0.0
    %1075 = vmatpush1.xpose.msra.mxu0 0.0
    %1076 = vmatprep.subr.mxu0 0.0
    %1077 = vmatpush1.xpose.msra.mxu0 0.0
    %1078 = vmatprep.subr.mxu0 0.0
    %1079 = vmatpush1.xpose.msra.mxu0 0.0
    %1080 = vmatprep.subr.mxu0 0.0
    %1081 = vmatpush1.xpose.msra.mxu0 0.0
    %1082 = vmatprep.subr.mxu0 0.0
    %1083 = vmatpush1.xpose.msra.mxu0 0.0
    %1084 = vmatprep.subr.mxu0 0.0
    %1085 = vmatpush1.xpose.msra.mxu0 0.0
    %1086 = vmatprep.subr.mxu0 0.0
    %1087 = vmatpush1.xpose.msra.mxu0 0.0
    %1088 = vmatprep.mubr.f32.mxu0 0.0
    %1089 = vmatmul.mubr.f32.gmra.mrb[0].mxu0 %v1020
    %v1090 = vpop.f32.mrb[0].mxu0
    %v1091 = vadd.f32 %v182, %v1090
    %v1092 = vpop.f32.mrb[0].mxu0
    %1093 = vdwg.mxu0
    %1094 = vrot.lane.b32.xlu0 %v171, 96
    %v1095 = vpop.permute.xlu0 %1094
    %1096 = vrot.lane.b32.xlu0 %v171, 48
    %v1097 = vpop.permute.xlu0 %1096
    %v1098 = vsel %vm192, %v1095, 0
    %v1100 = vsel %vm192, %v1097, 0
    %1102 = vmatprep.subr.mxu0 0.0
    %1103 = vmatpush1.xpose.msra.mxu0 %v1100
    %1104 = vmatprep.subr.mxu0 0.0
    %1105 = vmatpush1.xpose.msra.mxu0 0.0
    %1106 = vmatprep.subr.mxu0 0.0
    %1107 = vmatpush1.xpose.msra.mxu0 0.0
    %1108 = vmatprep.subr.mxu0 0.0
    %1109 = vmatpush1.xpose.msra.mxu0 0.0
    %1110 = vmatprep.subr.mxu0 0.0
    %1111 = vmatpush1.xpose.msra.mxu0 0.0
    %1112 = vmatprep.subr.mxu0 0.0
    %1113 = vmatpush1.xpose.msra.mxu0 0.0
    %1114 = vmatprep.subr.mxu0 0.0
    %1115 = vmatpush1.xpose.msra.mxu0 0.0
    %1116 = vmatprep.subr.mxu0 0.0
    %1117 = vmatpush1.xpose.msra.mxu0 0.0
    %1118 = vmatprep.subr.mxu0 0.0
    %1119 = vmatpush1.xpose.msra.mxu0 0.0
    %1120 = vmatprep.subr.mxu0 0.0
    %1121 = vmatpush1.xpose.msra.mxu0 0.0
    %1122 = vmatprep.subr.mxu0 0.0
    %1123 = vmatpush1.xpose.msra.mxu0 0.0
    %1124 = vmatprep.subr.mxu0 0.0
    %1125 = vmatpush1.xpose.msra.mxu0 0.0
    %1126 = vmatprep.subr.mxu0 0.0
    %1127 = vmatpush1.xpose.msra.mxu0 0.0
    %1128 = vmatprep.subr.mxu0 0.0
    %1129 = vmatpush1.xpose.msra.mxu0 0.0
    %1130 = vmatprep.subr.mxu0 0.0
    %1131 = vmatpush1.xpose.msra.mxu0 0.0
    %1132 = vmatprep.subr.mxu0 0.0
    %1133 = vmatpush1.xpose.msra.mxu0 0.0
    %1134 = vmatprep.subr.mxu0 0.0
    %1135 = vmatpush1.xpose.msra.mxu0 0.0
    %1136 = vmatprep.subr.mxu0 0.0
    %1137 = vmatpush1.xpose.msra.mxu0 0.0
    %1138 = vmatprep.subr.mxu0 0.0
    %1139 = vmatpush1.xpose.msra.mxu0 0.0
    %1140 = vmatprep.subr.mxu0 0.0
    %1141 = vmatpush1.xpose.msra.mxu0 0.0
    %1142 = vmatprep.subr.mxu0 0.0
    %1143 = vmatpush1.xpose.msra.mxu0 0.0
    %1144 = vmatprep.subr.mxu0 0.0
    %1145 = vmatpush1.xpose.msra.mxu0 0.0
    %1146 = vmatprep.subr.mxu0 0.0
    %1147 = vmatpush1.xpose.msra.mxu0 0.0
    %1148 = vmatprep.subr.mxu0 0.0
    %1149 = vmatpush1.xpose.msra.mxu0 0.0
    %1150 = vmatprep.subr.mxu0 0.0
    %1151 = vmatpush1.xpose.msra.mxu0 0.0
    %1152 = vmatprep.subr.mxu0 0.0
    %1153 = vmatpush1.xpose.msra.mxu0 0.0
    %1154 = vmatprep.subr.mxu0 0.0
    %1155 = vmatpush1.xpose.msra.mxu0 0.0
    %1156 = vmatprep.subr.mxu0 0.0
    %1157 = vmatpush1.xpose.msra.mxu0 0.0
    %1158 = vmatprep.subr.mxu0 0.0
    %1159 = vmatpush1.xpose.msra.mxu0 0.0
    %1160 = vmatprep.subr.mxu0 0.0
    %1161 = vmatpush1.xpose.msra.mxu0 0.0
    %1162 = vmatprep.subr.mxu0 0.0
    %1163 = vmatpush1.xpose.msra.mxu0 0.0
    %1164 = vmatprep.subr.mxu0 0.0
    %1165 = vmatpush1.xpose.msra.mxu0 0.0
    %1166 = vmatprep.mubr.f32.mxu0 0.0
    %1167 = vmatmul.mubr.f32.gmra.mrb[0].mxu0 %v1098
    %v1168 = vpop.f32.mrb[0].mxu0
    %v1169 = vadd.f32 %v186, %v1168
    %v1170 = vpop.f32.mrb[0].mxu0
    %1171 = vdwg.mxu0
    %v1172 = vsel %vm344, %v1091, -inf
    %1173 = vmax.xlane.f32.xlu0 %v1172
    %v1174 = vpop.xlane.xlu0 %1173
    %v1175 = vsel %vm344, %v1169, -inf
    %1176 = vmax.xlane.f32.xlu0 %v1175
    %v1177 = vpop.xlane.xlu0 %1176
    %v1178 = vsub.f32 %v1091, %v1174
    %v1179 = vsub.f32 %v1169, %v1177
    %v1180 = vmul.f32 %v1178, 1.442695
    %v1181 = vpow.pop %v1180
    %v1182 = vmul.f32 %v1179, 1.442695
    %v1183 = vpow.pop %v1182
    %v1184 = vsel %vm344, %v1181, 0.0
    %1185 = vadd.xlane.f32.xlu0 %v1184
    %v1186 = vpop.xlane.xlu0 %1185
    %v1187 = vsel %vm344, %v1183, 0.0
    %1188 = vadd.xlane.f32.xlu0 %v1187
    %v1189 = vpop.xlane.xlu0 %1188
    %v1190 = vrcp.pop %v1186
    %v1191 = vrcp.pop %v1189
    %v1192 = vmul.f32 %v1181, %v1190
    %v1193 = vmul.f32 %v1183, %v1191
    %v1195 = vsel %vm344, %v1192, 0
    %1197 = vmatprep.subr.mxu0 0.0
    %1198 = vmatpush1.msra.mxu0 %v167
    %1199 = vmatprep.subr.mxu0 0.0
    %1200 = vmatpush1.msra.mxu0 0.0
    %1201 = vmatprep.subr.mxu0 0.0
    %1202 = vmatpush1.msra.mxu0 0.0
    %1203 = vmatprep.subr.mxu0 0.0
    %1204 = vmatpush1.msra.mxu0 0.0
    %1205 = vmatprep.subr.mxu0 0.0
    %1206 = vmatpush1.msra.mxu0 0.0
    %1207 = vmatprep.subr.mxu0 0.0
    %1208 = vmatpush1.msra.mxu0 0.0
    %1209 = vmatprep.subr.mxu0 0.0
    %1210 = vmatpush1.msra.mxu0 0.0
    %1211 = vmatprep.subr.mxu0 0.0
    %1212 = vmatpush1.msra.mxu0 0.0
    %1213 = vmatprep.subr.mxu0 0.0
    %1214 = vmatpush1.msra.mxu0 0.0
    %1215 = vmatprep.subr.mxu0 0.0
    %1216 = vmatpush1.msra.mxu0 0.0
    %1217 = vmatprep.subr.mxu0 0.0
    %1218 = vmatpush1.msra.mxu0 0.0
    %1219 = vmatprep.subr.mxu0 0.0
    %1220 = vmatpush1.msra.mxu0 0.0
    %1221 = vmatprep.subr.mxu0 0.0
    %1222 = vmatpush1.msra.mxu0 0.0
    %1223 = vmatprep.subr.mxu0 0.0
    %1224 = vmatpush1.msra.mxu0 0.0
    %1225 = vmatprep.subr.mxu0 0.0
    %1226 = vmatpush1.msra.mxu0 0.0
    %1227 = vmatprep.subr.mxu0 0.0
    %1228 = vmatpush1.msra.mxu0 0.0
    %1229 = vmatprep.subr.mxu0 0.0
    %1230 = vmatpush1.msra.mxu0 0.0
    %1231 = vmatprep.subr.mxu0 0.0
    %1232 = vmatpush1.msra.mxu0 0.0
    %1233 = vmatprep.subr.mxu0 0.0
    %1234 = vmatpush1.msra.mxu0 0.0
    %1235 = vmatprep.subr.mxu0 0.0
    %1236 = vmatpush1.msra.mxu0 0.0
    %1237 = vmatprep.subr.mxu0 0.0
    %1238 = vmatpush1.msra.mxu0 0.0
    %1239 = vmatprep.subr.mxu0 0.0
    %1240 = vmatpush1.msra.mxu0 0.0
    %1241 = vmatprep.subr.mxu0 0.0
    %1242 = vmatpush1.msra.mxu0 0.0
    %1243 = vmatprep.subr.mxu0 0.0
    %1244 = vmatpush1.msra.mxu0 0.0
    %1245 = vmatprep.subr.mxu0 0.0
    %1246 = vmatpush1.msra.mxu0 0.0
    %1247 = vmatprep.subr.mxu0 0.0
    %1248 = vmatpush1.msra.mxu0 0.0
    %1249 = vmatprep.subr.mxu0 0.0
    %1250 = vmatpush1.msra.mxu0 0.0
    %1251 = vmatprep.subr.mxu0 0.0
    %1252 = vmatpush1.msra.mxu0 0.0
    %1253 = vmatprep.subr.mxu0 0.0
    %1254 = vmatpush1.msra.mxu0 0.0
    %1255 = vmatprep.subr.mxu0 0.0
    %1256 = vmatpush1.msra.mxu0 0.0
    %1257 = vmatprep.subr.mxu0 0.0
    %1258 = vmatpush1.msra.mxu0 0.0
    %1259 = vmatprep.subr.mxu0 0.0
    %1260 = vmatpush1.msra.mxu0 0.0
    %1261 = vmatprep.mubr.f32.mxu0 0.0
    %1262 = vmatmul.mubr.f32.gmra.mrb[0].mxu0 %v1195
    %v1263 = vpop.f32.mrb[0].mxu0
    %v1264 = vadd.f32 0.0, %v1263
    %v1265 = vpop.f32.mrb[0].mxu0
    %1266 = vdwg.mxu0
    %v1268 = vsel %vm344, %v1193, 0
    %1270 = vmatprep.subr.mxu0 0.0
    %1271 = vmatpush1.msra.mxu0 %v173
    %1272 = vmatprep.subr.mxu0 0.0
    %1273 = vmatpush1.msra.mxu0 0.0
    %1274 = vmatprep.subr.mxu0 0.0
    %1275 = vmatpush1.msra.mxu0 0.0
    %1276 = vmatprep.subr.mxu0 0.0
    %1277 = vmatpush1.msra.mxu0 0.0
    %1278 = vmatprep.subr.mxu0 0.0
    %1279 = vmatpush1.msra.mxu0 0.0
    %1280 = vmatprep.subr.mxu0 0.0
    %1281 = vmatpush1.msra.mxu0 0.0
    %1282 = vmatprep.subr.mxu0 0.0
    %1283 = vmatpush1.msra.mxu0 0.0
    %1284 = vmatprep.subr.mxu0 0.0
    %1285 = vmatpush1.msra.mxu0 0.0
    %1286 = vmatprep.subr.mxu0 0.0
    %1287 = vmatpush1.msra.mxu0 0.0
    %1288 = vmatprep.subr.mxu0 0.0
    %1289 = vmatpush1.msra.mxu0 0.0
    %1290 = vmatprep.subr.mxu0 0.0
    %1291 = vmatpush1.msra.mxu0 0.0
    %1292 = vmatprep.subr.mxu0 0.0
    %1293 = vmatpush1.msra.mxu0 0.0
    %1294 = vmatprep.subr.mxu0 0.0
    %1295 = vmatpush1.msra.mxu0 0.0
    %1296 = vmatprep.subr.mxu0 0.0
    %1297 = vmatpush1.msra.mxu0 0.0
    %1298 = vmatprep.subr.mxu0 0.0
    %1299 = vmatpush1.msra.mxu0 0.0
    %1300 = vmatprep.subr.mxu0 0.0
    %1301 = vmatpush1.msra.mxu0 0.0
    %1302 = vmatprep.subr.mxu0 0.0
    %1303 = vmatpush1.msra.mxu0 0.0
    %1304 = vmatprep.subr.mxu0 0.0
    %1305 = vmatpush1.msra.mxu0 0.0
    %1306 = vmatprep.subr.mxu0 0.0
    %1307 = vmatpush1.msra.mxu0 0.0
    %1308 = vmatprep.subr.mxu0 0.0
    %1309 = vmatpush1.msra.mxu0 0.0
    %1310 = vmatprep.subr.mxu0 0.0
    %1311 = vmatpush1.msra.mxu0 0.0
    %1312 = vmatprep.subr.mxu0 0.0
    %1313 = vmatpush1.msra.mxu0 0.0
    %1314 = vmatprep.subr.mxu0 0.0
    %1315 = vmatpush1.msra.mxu0 0.0
    %1316 = vmatprep.subr.mxu0 0.0
    %1317 = vmatpush1.msra.mxu0 0.0
    %1318 = vmatprep.subr.mxu0 0.0
    %1319 = vmatpush1.msra.mxu0 0.0
    %1320 = vmatprep.subr.mxu0 0.0
    %1321 = vmatpush1.msra.mxu0 0.0
    %1322 = vmatprep.subr.mxu0 0.0
    %1323 = vmatpush1.msra.mxu0 0.0
    %1324 = vmatprep.subr.mxu0 0.0
    %1325 = vmatpush1.msra.mxu0 0.0
    %1326 = vmatprep.subr.mxu0 0.0
    %1327 = vmatpush1.msra.mxu0 0.0
    %1328 = vmatprep.subr.mxu0 0.0
    %1329 = vmatpush1.msra.mxu0 0.0
    %1330 = vmatprep.subr.mxu0 0.0
    %1331 = vmatpush1.msra.mxu0 0.0
    %1332 = vmatprep.subr.mxu0 0.0
    %1333 = vmatpush1.msra.mxu0 0.0
    %1334 = vmatprep.mubr.f32.mxu0 0.0
    %1335 = vmatmul.mubr.f32.gmra.mrb[0].mxu0 %v1268
    %v1336 = vpop.f32.mrb[0].mxu0
    %v1337 = vadd.f32 0.0, %v1336
    %v1338 = vpop.f32.mrb[0].mxu0
    %1339 = vdwg.mxu0
    %s1340 = scalar_lea.vmem [#allocation7], 32
    %v1341 = vld [vmem:[%s1340] sm:$0xff]
    %v1342 = vld [vmem:[%s1340 + $0x8] sm:$0xff]
    %v1344 = vsel %vm192, %v1264, 0
    %v1347 = vsel %vm192, %v1337, 0
    %1349 = vmatprep.subr.mxu0 0.0
    %1350 = vmatpush1.msra.mxu0 %v1341
    %1351 = vmatprep.subr.mxu0 0.0
    %1352 = vmatpush1.msra.mxu0 %v1342
    %1353 = vmatprep.subr.mxu0 0.0
    %1354 = vmatpush1.msra.mxu0 0.0
    %1355 = vmatprep.subr.mxu0 0.0
    %1356 = vmatpush1.msra.mxu0 0.0
    %1357 = vmatprep.subr.mxu0 0.0
    %1358 = vmatpush1.msra.mxu0 0.0
    %1359 = vmatprep.subr.mxu0 0.0
    %1360 = vmatpush1.msra.mxu0 0.0
    %1361 = vmatprep.subr.mxu0 0.0
    %1362 = vmatpush1.msra.mxu0 0.0
    %1363 = vmatprep.subr.mxu0 0.0
    %1364 = vmatpush1.msra.mxu0 0.0
    %1365 = vmatprep.subr.mxu0 0.0
    %1366 = vmatpush1.msra.mxu0 0.0
    %1367 = vmatprep.subr.mxu0 0.0
    %1368 = vmatpush1.msra.mxu0 0.0
    %1369 = vmatprep.subr.mxu0 0.0
    %1370 = vmatpush1.msra.mxu0 0.0
    %1371 = vmatprep.subr.mxu0 0.0
    %1372 = vmatpush1.msra.mxu0 0.0
    %1373 = vmatprep.subr.mxu0 0.0
    %1374 = vmatpush1.msra.mxu0 0.0
    %1375 = vmatprep.subr.mxu0 0.0
    %1376 = vmatpush1.msra.mxu0 0.0
    %1377 = vmatprep.subr.mxu0 0.0
    %1378 = vmatpush1.msra.mxu0 0.0
    %1379 = vmatprep.subr.mxu0 0.0
    %1380 = vmatpush1.msra.mxu0 0.0
    %1381 = vmatprep.subr.mxu0 0.0
    %1382 = vmatpush1.msra.mxu0 0.0
    %1383 = vmatprep.subr.mxu0 0.0
    %1384 = vmatpush1.msra.mxu0 0.0
    %1385 = vmatprep.subr.mxu0 0.0
    %1386 = vmatpush1.msra.mxu0 0.0
    %1387 = vmatprep.subr.mxu0 0.0
    %1388 = vmatpush1.msra.mxu0 0.0
    %1389 = vmatprep.subr.mxu0 0.0
    %1390 = vmatpush1.msra.mxu0 0.0
    %1391 = vmatprep.subr.mxu0 0.0
    %1392 = vmatpush1.msra.mxu0 0.0
    %1393 = vmatprep.subr.mxu0 0.0
    %1394 = vmatpush1.msra.mxu0 0.0
    %1395 = vmatprep.subr.mxu0 0.0
    %1396 = vmatpush1.msra.mxu0 0.0
    %1397 = vmatprep.subr.mxu0 0.0
    %1398 = vmatpush1.msra.mxu0 0.0
    %1399 = vmatprep.subr.mxu0 0.0
    %1400 = vmatpush1.msra.mxu0 0.0
    %1401 = vmatprep.subr.mxu0 0.0
    %1402 = vmatpush1.msra.mxu0 0.0
    %1403 = vmatprep.subr.mxu0 0.0
    %1404 = vmatpush1.msra.mxu0 0.0
    %1405 = vmatprep.subr.mxu0 0.0
    %1406 = vmatpush1.msra.mxu0 0.0
    %1407 = vmatprep.subr.mxu0 0.0
    %1408 = vmatpush1.msra.mxu0 0.0
    %1409 = vmatprep.subr.mxu0 0.0
    %1410 = vmatpush1.msra.mxu0 0.0
    %1411 = vmatprep.subr.mxu0 0.0
    %1412 = vmatpush1.msra.mxu0 0.0
    %1413 = vmatprep.mubr.f32.mxu0 0.0
    %1414 = vmatmul.mubr.f32.gmra.mrb[0].mxu0 %v1344
    %v1415 = vpop.f32.mrb[0].mxu0
    %v1416 = vadd.f32 0.0, %v1415
    %v1417 = vpop.f32.mrb[0].mxu0
    %1418 = vmatprep.mubr.f32.mxu0 0.0
    %1419 = vmatmul.mubr.f32.gmra.mrb[0].mxu0 %v1347
    %v1420 = vpop.f32.mrb[0].mxu0
    %v1421 = vadd.f32 0.0, %v1420
    %v1422 = vpop.f32.mrb[0].mxu0
    %1423 = vdwg.mxu0
    %v1424 = vadd.f32 %v1008, %v1416
    %v1425 = vadd.f32 %v1013, %v1421
    %v1426 = vld [vmem:[%s5] sm:$0x1]
    %v1428 = vlaneseq
    %v1429 = vshrl.u32 %v1428, 7
    %v1430 = vsub.s32 0, %v1429
    %v1431 = vrot.slane %v1426, %v1430
    %v1433 = vadd.f32 %v1424, %v1431
    %v1434 = vadd.f32 %v1425, %v1431
    %1435 = vst [vmem:[#allocation8] sm:$0xff] %v1433
    %1436 = vst [vmem:[#allocation8 + $0x8] sm:$0xff] %v1434
    // Predicated region
    $region38: #{tpu_custom_call.1} parent=1 // pred_check
      _
    $region39: #{tpu_custom_call.1} parent=1 // pred_check_branch
      %1438 = sbr.rel (0) target = $region41
    $region40: #{tpu_custom_call.1} parent=1 // pred_region
      %s1440 = ssub.s32 256, 256
      %1441 = vsyncadd [#allocation4], %s1440
      %s1442 = sshll.u32 [#allocation8], 4
      %s1443 = int_to_ptr.vmem [resolvable:$true] %s1442
      %1448 = dma.vmem_to_hbm [thread:$0]  %s1443, 256, %s6, [#allocation4], 128, 128, 8
    $region41: #{tpu_custom_call.1} parent=1 // pred_fallthru
      _
    // Predicated region
    $region42: #{tpu_custom_call.1} parent=1 // pred_check
      _
    $region43: #{tpu_custom_call.1} parent=1 // pred_check_branch
      %1450 = sbr.rel (0) target = $region45
    $region44: #{tpu_custom_call.1} parent=1 // pred_region
      %1451 = dma.done [#allocation4], 256
    $region45: #{tpu_custom_call.1} parent=1 // pred_fallthru
      _
    %1452 = vsyncpa [#allocation3], 1
    %1453 = vsyncpa [#allocation6], 1
    %1454 = vsyncpa [#allocation4], 1

</llo_original>
